<compile_context>
chip_gen: v7x
topology: tpu7x:2x2x1
jax: 0.10.0
libtpu: 0.0.40
codegen_flags: <defaults>
</compile_context>

<pallas_src>
import functools
import math

import jax
import jax.numpy as jnp
from jax import lax
from jax.experimental import pallas as pl
from jax.experimental.pallas import tpu as pltpu

_BN_EPS = 1e-5


def _gelu(x):
    # TODO(synk): PyTorch nn.GELU() defaults to exact erf; tanh approximation
    # used here (erf is not guaranteed to lower in Mosaic).  ~1e-3 deviation.
    c = math.sqrt(2.0 / math.pi)
    return 0.5 * x * (1.0 + jnp.tanh(c * (x + 0.044715 * x * x * x)))


def _pick_tile(dim, candidates):
    """Largest candidate dividing `dim`; else the full dim (single tile)."""
    for c in candidates:
        if dim % c == 0:
            return c
    return dim


# ---------------------------------------------------------------------------
# Kernel 1: tiled matmul + bias + GELU + folded-BatchNorm affine.
# Used for the patch-embedding conv (stride == kernel => pure matmul over
# flattened patches).  bf16 in / bf16 out, f32 accumulation on the MXU.
# ---------------------------------------------------------------------------
def _matmul_act_bn_kernel(x_ref, w_ref, b_ref, scale_ref, shift_ref, o_ref,
                          acc_ref):
    @pl.when(pl.program_id(2) == 0)
    def _init():
        acc_ref[...] = jnp.zeros_like(acc_ref)

    acc_ref[...] += jnp.dot(x_ref[...], w_ref[...],
                            preferred_element_type=jnp.float32)

    @pl.when(pl.program_id(2) == pl.num_programs(2) - 1)
    def _finalize():
        y = _gelu(acc_ref[...] + b_ref[...])
        o_ref[...] = (y * scale_ref[...] + shift_ref[...]).astype(o_ref.dtype)


def matmul_act_bn(x_bf16, w_bf16, b, scale, shift):
    m, kk = x_bf16.shape
    n = w_bf16.shape[1]
    # bf16 activations: min sublane tile is 16, so the `8` candidate is gone.
    # Tiles are multiples of (16, 128) or the full dim (toy shapes fall back
    # to whole-dim blocks), sized for the default scoped VMEM on v5e/v6e/v7x.
    tm = _pick_tile(m, (512, 256, 128, 64, 32, 16))
    tn = _pick_tile(n, (512, 256, 128))
    tk = _pick_tile(kk, (512, 256, 128))
    grid = (m // tm, n // tn, kk // tk)
    return pl.pallas_call(
        _matmul_act_bn_kernel,
        out_shape=jax.ShapeDtypeStruct((m, n), jnp.bfloat16),
        grid=grid,
        in_specs=[
            pl.BlockSpec((tm, tk), lambda i, j, k_: (i, k_)),
            pl.BlockSpec((tk, tn), lambda i, j, k_: (k_, j)),
            pl.BlockSpec((1, tn), lambda i, j, k_: (0, j)),
            pl.BlockSpec((1, tn), lambda i, j, k_: (0, j)),
            pl.BlockSpec((1, tn), lambda i, j, k_: (0, j)),
        ],
        out_specs=pl.BlockSpec((tm, tn), lambda i, j, k_: (i, j)),
        scratch_shapes=[pltpu.VMEM((tm, tn), jnp.float32)],
        compiler_params=pltpu.CompilerParams(
            dimension_semantics=("parallel", "parallel", "arbitrary")),
    )(x_bf16, w_bf16, b.reshape(1, -1), scale.reshape(1, -1),
      shift.reshape(1, -1))


# ---------------------------------------------------------------------------
# Kernel 2: fused ConvMixer layer.
#   depthwise kxk conv ('same') + bias + GELU + BN + residual   (f32 math)
#   -> 1x1 pointwise conv against a VMEM-resident bf16 (h,h) weight
#   -> bias + GELU + BN -> bf16 output.
# The zero-padded image is built once per batch element in a VMEM scratch;
# row chunks are processed with lax.fori_loop so only one shifted slab and a
# small f32 accumulator are live at a time.
# ---------------------------------------------------------------------------
def _mixer_layer_kernel(x_ref, dww_ref, dwb_ref, dws_ref, dwt_ref,
                        pww_ref, pwb_ref, pws_ref, pwt_ref, o_ref,
                        pad_ref, *, hp, wp, ch, k, pad, rt):
    x_img = x_ref[0]                                   # (hp, wp, ch) bf16

    # Zero-padded copy of the image, built once per batch element (bf16).
    if pad:
        zc = jnp.zeros((hp, pad, ch), x_img.dtype)
        zr = jnp.zeros((pad, wp + 2 * pad, ch), x_img.dtype)
        pad_ref[...] = jnp.concatenate(
            [zr, jnp.concatenate([zc, x_img, zc], axis=1), zr], axis=0)
    else:
        pad_ref[...] = x_img

    dww = dww_ref[...]        # (k*k, ch) f32 tap weights, loaded once
    dwb = dwb_ref[...]        # (1, ch)
    dws = dws_ref[...]
    dwt = dwt_ref[...]
    pwb = pwb_ref[...]
    pws = pws_ref[...]
    pwt = pwt_ref[...]

    nchunks = hp // rt

    def chunk(c, carry):
        r0 = pl.multiple_of(c * rt, rt)
        acc = jnp.zeros((rt, wp, ch), jnp.float32)
        for dy in range(k):                            # static unroll over taps
            # One row slab live at a time (bf16), sliced from the padded copy.
            rows = pad_ref[pl.ds(r0 + dy, rt), :, :]   # (rt, wp+2p, ch)
            for dx in range(k):
                t = dy * k + dx
                acc = acc + rows[:, dx:dx + wp, :] * dww[t:t + 1, :]
        y = _gelu(acc + dwb) * dws + dwt
        # Residual add in f32 (bf16 storage only at the HBM boundary).
        resid = y + x_ref[0, pl.ds(r0, rt), :, :].astype(jnp.float32)
        # Fused 1x1 pointwise conv against the VMEM-resident bf16 weight.
        z = jnp.dot(resid.reshape(rt * wp, ch).astype(jnp.bfloat16),
                    pww_ref[...], preferred_element_type=jnp.float32)
        z = _gelu(z + pwb) * pws + pwt
        o_ref[0, pl.ds(r0, rt), :, :] = z.reshape(rt, wp, ch).astype(o_ref.dtype)
        return carry

    lax.fori_loop(0, nchunks, chunk, 0)


def convmixer_layer(x_nhwc, dw_w_flat, dw_b, dw_scale, dw_shift,
                    pw_w_bf16, pw_b, pw_scale, pw_shift, k):
    n, hp, wp, ch = x_nhwc.shape
    assert k % 2 == 1, "depthwise 'same' padding assumes an odd kernel_size"
    pad = (k - 1) // 2
    rt = _pick_tile(hp, (8, 4, 2))     # row chunk: keeps the f32 acc small
    # TODO(synk): very large h (h*h*2B beyond a few MiB headroom) should fall
    # back to a tiled pointwise weight instead of a fully resident one.

    kern = functools.partial(_mixer_layer_kernel, hp=hp, wp=wp, ch=ch,
                             k=k, pad=pad, rt=rt)

    # Rough VMEM footprint: double-buffered bf16 in/out blocks + padded copy
    # + resident pointwise weight + f32 chunk temporaries.  Only raise the
    # scoped limit when the default budget would not fit.
    est = (2 * 2 * hp * wp * ch * 2
           + (hp + 2 * pad) * (wp + 2 * pad) * ch * 2
           + 2 * ch * ch * 2
           + 6 * rt * wp * ch * 4)
    cp_kwargs = dict(dimension_semantics=("parallel",))
    if est > 24 * 1024 * 1024:
        cp_kwargs["vmem_limit_bytes"] = min(int(est * 1.25), 60 * 1024 * 1024)

    return pl.pallas_call(
        kern,
        out_shape=jax.ShapeDtypeStruct((n, hp, wp, ch), jnp.bfloat16),
        grid=(n,),
        in_specs=[
            pl.BlockSpec((1, hp, wp, ch), lambda b: (b, 0, 0, 0)),  # x (bf16)
            pl.BlockSpec((k * k, ch), lambda b: (0, 0)),            # dw taps
            pl.BlockSpec((1, ch), lambda b: (0, 0)),                # dw bias
            pl.BlockSpec((1, ch), lambda b: (0, 0)),                # dw scale
            pl.BlockSpec((1, ch), lambda b: (0, 0)),                # dw shift
            pl.BlockSpec((ch, ch), lambda b: (0, 0)),               # pw W bf16
            pl.BlockSpec((1, ch), lambda b: (0, 0)),                # pw bias
            pl.BlockSpec((1, ch), lambda b: (0, 0)),                # pw scale
            pl.BlockSpec((1, ch), lambda b: (0, 0)),                # pw shift
        ],
        out_specs=pl.BlockSpec((1, hp, wp, ch), lambda b: (b, 0, 0, 0)),
        scratch_shapes=[
            pltpu.VMEM((hp + 2 * pad, wp + 2 * pad, ch), jnp.bfloat16)],
        compiler_params=pltpu.CompilerParams(**cp_kwargs),
    )(x_nhwc, dw_w_flat, dw_b.reshape(1, -1), dw_scale.reshape(1, -1),
      dw_shift.reshape(1, -1), pw_w_bf16, pw_b.reshape(1, -1),
      pw_scale.reshape(1, -1), pw_shift.reshape(1, -1))


# ---------------------------------------------------------------------------
# Kernel 3: classification head — global average pool + one (N,ch)x(ch,ncls)
# matmul for the whole batch (instead of N single-row matmuls).
# ---------------------------------------------------------------------------
def _head_kernel(x_ref, w_ref, b_ref, o_ref):
    pooled = jnp.mean(x_ref[...].astype(jnp.float32), axis=1)       # (n, ch)
    o_ref[...] = (jnp.dot(pooled.astype(jnp.bfloat16), w_ref[...],
                          preferred_element_type=jnp.float32)
                  + b_ref[...]).astype(o_ref.dtype)


def head_pool_linear(x_nhwc, w_bf16, b):
    # TODO(synk): fold the average pool into the last layer kernel's epilogue
    # to avoid this final re-read of the (bf16) activations from HBM.
    n, hp, wp, ch = x_nhwc.shape
    ncls = w_bf16.shape[1]
    x3 = x_nhwc.reshape(n, hp * wp, ch)
    return pl.pallas_call(
        _head_kernel,
        out_shape=jax.ShapeDtypeStruct((n, ncls), jnp.float32),
        grid=(1,),
        in_specs=[
            pl.BlockSpec((n, hp * wp, ch), lambda i: (0, 0, 0)),
            pl.BlockSpec((ch, ncls), lambda i: (0, 0)),
            pl.BlockSpec((1, ncls), lambda i: (0, 0)),
        ],
        out_specs=pl.BlockSpec((n, ncls), lambda i: (0, 0)),
    )(x3, w_bf16, b.reshape(1, -1))


# ---------------------------------------------------------------------------
# Parameters (deterministic synthetic init, matching PyTorch module shapes)
# ---------------------------------------------------------------------------
def _bn_params(key, ch):
    k1, k2, k3, k4 = jax.random.split(key, 4)
    return dict(
        gamma=1.0 + 0.1 * jax.random.normal(k1, (ch,), jnp.float32),
        beta=0.1 * jax.random.normal(k2, (ch,), jnp.float32),
        mean=0.1 * jax.random.normal(k3, (ch,), jnp.float32),
        var=jax.random.uniform(k4, (ch,), jnp.float32, 0.5, 1.5),
    )


def _bn_affine(bn):
    scale = bn['gamma'] / jnp.sqrt(bn['var'] + _BN_EPS)
    shift = bn['beta'] - bn['mean'] * scale
    return scale, shift


def init_params(key, c_in, h, depth, k, p, n_classes):
    keys = iter(jax.random.split(key, 5 + 6 * depth))
    params = dict(
        emb_w=0.1 * jax.random.normal(next(keys), (h, c_in, p, p), jnp.float32),
        emb_b=0.1 * jax.random.normal(next(keys), (h,), jnp.float32),
        emb_bn=_bn_params(next(keys), h),
        layers=[],
    )
    for _ in range(depth):
        params['layers'].append(dict(
            dw_w=0.1 * jax.random.normal(next(keys), (h, 1, k, k), jnp.float32),
            dw_b=0.1 * jax.random.normal(next(keys), (h,), jnp.float32),
            dw_bn=_bn_params(next(keys), h),
            pw_w=0.1 * jax.random.normal(next(keys), (h, h, 1, 1), jnp.float32),
            pw_b=0.1 * jax.random.normal(next(keys), (h,), jnp.float32),
            pw_bn=_bn_params(next(keys), h),
        ))
    params['head_w'] = 0.1 * jax.random.normal(next(keys), (n_classes, h),
                                               jnp.float32)
    params['head_b'] = 0.1 * jax.random.normal(next(keys), (n_classes,),
                                               jnp.float32)
    return params


# ---------------------------------------------------------------------------
# Forward pass (Pallas kernels for every hot path; glue is reshape/transpose)
# ---------------------------------------------------------------------------
def convmixer_forward(x_nchw, params, *, k, p):
    n, c, hh, ww = x_nchw.shape
    hp, wp = hh // p, ww // p
    ch = params['emb_w'].shape[0]

    # patch embedding: stride-p conv == matmul over flattened patches (bf16)
    patches = x_nchw.reshape(n, c, hp, p, wp, p).transpose(0, 2, 4, 1, 3, 5)
    patches = patches.reshape(n * hp * wp, c * p * p).astype(jnp.bfloat16)
    emb_w = params['emb_w'].reshape(ch, c * p * p).T.astype(jnp.bfloat16)
    scale, shift = _bn_affine(params['emb_bn'])
    y = matmul_act_bn(patches, emb_w, params['emb_b'], scale, shift)
    y = y.reshape(n, hp, wp, ch)  # NHWC, bf16

    # ConvMixer layers: one fused (depthwise + residual + pointwise) kernel
    for layer in params['layers']:
        dw_w = layer['dw_w'].reshape(ch, k * k).T               # (k*k, h) f32
        pw_w = layer['pw_w'].reshape(ch, ch).T.astype(jnp.bfloat16)
        s1, t1 = _bn_affine(layer['dw_bn'])
        s2, t2 = _bn_affine(layer['pw_bn'])
        y = convmixer_layer(y, dw_w, layer['dw_b'], s1, t1,
                            pw_w, layer['pw_b'], s2, t2, k)

    # classification head
    return head_pool_linear(y, params['head_w'].T.astype(jnp.bfloat16),
                            params['head_b'])


# ---------------------------------------------------------------------------
# Pure-JAX (XLA conv) reference for correctness checking
# ---------------------------------------------------------------------------
def reference_forward(x, params, *, k, p):
    dn = ('NCHW', 'OIHW', 'NCHW')
    ch = params['emb_w'].shape[0]

    def bn(z, bnp):
        s, t = _bn_affine(bnp)
        return z * s[None, :, None, None] + t[None, :, None, None]

    y = lax.conv_general_dilated(x, params['emb_w'], (p, p), 'VALID',
                                 dimension_numbers=dn)
    y = bn(_gelu(y + params['emb_b'][None, :, None, None]), params['emb_bn'])
    pad = (k - 1) // 2
    for layer in params['layers']:
        z = lax.conv_general_dilated(y, layer['dw_w'], (1, 1),
                                     [(pad, pad), (pad, pad)],
                                     dimension_numbers=dn,
                                     feature_group_count=ch)
        z = bn(_gelu(z + layer['dw_b'][None, :, None, None]), layer['dw_bn'])
        y = y + z
        z = lax.conv_general_dilated(y, layer['pw_w'], (1, 1), 'VALID',
                                     dimension_numbers=dn)
        y = bn(_gelu(z + layer['pw_b'][None, :, None, None]), layer['pw_bn'])
    pooled = y.mean(axis=(2, 3))
    return pooled @ params['head_w'].T + params['head_b']


if __name__ == "__main__":
    N, C, H, W = 2, 4, 16, 16
    h, depth, kernel_size, patch_size, n_classes = 32, 2, 3, 4, 19

    key = jax.random.PRNGKey(0)
    kp, kx = jax.random.split(key)
    params = init_params(kp, C, h, depth, kernel_size, patch_size, n_classes)
    x = jax.random.normal(kx, (N, C, H, W), jnp.float32)

    fwd = jax.jit(functools.partial(convmixer_forward,
                                    k=kernel_size, p=patch_size))
    out = jax.block_until_ready(fwd(x, params))

    ref = reference_forward(x, params, k=kernel_size, p=patch_size)
    assert out.shape == (N, n_classes), out.shape
    # Tolerance accounts for bf16 activation storage + bf16 MXU inputs (f32
    # accumulation everywhere); genuine layout/conv bugs would be O(0.1-1).
    assert jnp.allclose(out, ref, atol=5e-2, rtol=5e-2), \
        float(jnp.max(jnp.abs(out - ref)))
    print("KERNEL_OK")
</pallas_src>

<mosaic_0001>
module attributes {stable_mosaic.version = 11 : i64} {
  func.func @_matmul_act_bn_kernel(%arg0: i32, %arg1: i32, %arg2: i32, %arg3: memref<32x64xbf16, #tpu.memory_space<vmem>>, %arg4: memref<64x32xbf16, #tpu.memory_space<vmem>>, %arg5: memref<1x32xf32, #tpu.memory_space<vmem>>, %arg6: memref<1x32xf32, #tpu.memory_space<vmem>>, %arg7: memref<1x32xf32, #tpu.memory_space<vmem>>, %arg8: memref<32x32xbf16, #tpu.memory_space<vmem>>, %arg9: memref<32x32xf32, #tpu.memory_space<vmem>>) attributes {dimension_semantics = [#tpu.dimension_semantics<parallel>, #tpu.dimension_semantics<parallel>, #tpu.dimension_semantics<arbitrary>], iteration_bounds = array<i64: 1, 1, 1>, scalar_prefetch = 0 : i64, scratch_operands = 1 : i64, tpu.core_type = #tpu.core_type<tc>, window_params = [{transform_indices = @transform_0, window_bounds = array<i64: 32, 64>}, {transform_indices = @transform_1, window_bounds = array<i64: 64, 32>}, {transform_indices = @transform_2, window_bounds = array<i64: 1, 32>}, {transform_indices = @transform_3, window_bounds = array<i64: 1, 32>}, {transform_indices = @transform_4, window_bounds = array<i64: 1, 32>}, {transform_indices = @transform_5, window_bounds = array<i64: 32, 32>}]} {
    %c0_i32 = arith.constant 0 : i32
    %0 = arith.cmpi eq, %arg2, %c0_i32 : i32
    %1 = arith.extui %0 : i1 to i32
    %c0_i32_0 = arith.constant 0 : i32
    %2 = arith.cmpi ne, %1, %c0_i32_0 : i32
    scf.if %2 {
      %cst_10 = arith.constant 0.000000e+00 : f32
      %12 = vector.broadcast %cst_10 : f32 to vector<32x32xf32>
      %c0_11 = arith.constant 0 : index
      %c0_12 = arith.constant 0 : index
      %13 = vector.load %arg9[%c0_11, %c0_12] : memref<32x32xf32, #tpu.memory_space<vmem>>, vector<32x32xf32>
      tpu.vector_store %arg9[%c0_11, %c0_12], %12 {strides = array<i32>} : memref<32x32xf32, #tpu.memory_space<vmem>>, vector<32x32xf32>,
    } else {
    }
    %c0 = arith.constant 0 : index
    %c0_1 = arith.constant 0 : index
    %3 = vector.load %arg9[%c0, %c0_1] : memref<32x32xf32, #tpu.memory_space<vmem>>, vector<32x32xf32>
    %c0_2 = arith.constant 0 : index
    %c0_3 = arith.constant 0 : index
    %4 = vector.load %arg3[%c0_2, %c0_3] : memref<32x64xbf16, #tpu.memory_space<vmem>>, vector<32x64xbf16>
    %c0_4 = arith.constant 0 : index
    %c0_5 = arith.constant 0 : index
    %5 = vector.load %arg4[%c0_4, %c0_5] : memref<64x32xbf16, #tpu.memory_space<vmem>>, vector<64x32xbf16>
    %cst = arith.constant dense<0.000000e+00> : vector<32x32xf32>
    %6 = tpu.matmul %4, %5, %cst {dimension_numbers = #tpu.dot_dimension_numbers<[1], [0], [0], [1], [0, 0, 1, 1], [], []>} : vector<32x64xbf16>, vector<64x32xbf16>, vector<32x32xf32> -> vector<32x32xf32>
    %7 = arith.addf %3, %6 : vector<32x32xf32>
    %c0_6 = arith.constant 0 : index
    %c0_7 = arith.constant 0 : index
    %8 = vector.load %arg9[%c0_6, %c0_7] : memref<32x32xf32, #tpu.memory_space<vmem>>, vector<32x32xf32>
    tpu.vector_store %arg9[%c0_6, %c0_7], %7 {strides = array<i32>} : memref<32x32xf32, #tpu.memory_space<vmem>>, vector<32x32xf32>,
    %c0_i32_8 = arith.constant 0 : i32
    %9 = arith.cmpi eq, %arg2, %c0_i32_8 : i32
    %10 = arith.extui %9 : i1 to i32
    %c0_i32_9 = arith.constant 0 : i32
    %11 = arith.cmpi ne, %10, %c0_i32_9 : i32
    scf.if %11 {
      %c0_10 = arith.constant 0 : index
      %c0_11 = arith.constant 0 : index
      %12 = vector.load %arg9[%c0_10, %c0_11] : memref<32x32xf32, #tpu.memory_space<vmem>>, vector<32x32xf32>
      %c0_12 = arith.constant 0 : index
      %c0_13 = arith.constant 0 : index
      %13 = vector.load %arg5[%c0_12, %c0_13] : memref<1x32xf32, #tpu.memory_space<vmem>>, vector<1x32xf32>
      %14 = vector.broadcast %13 : vector<1x32xf32> to vector<32x32xf32>
      %15 = arith.addf %12, %14 : vector<32x32xf32>
      %cst_14 = arith.constant 5.000000e-01 : f32
      %16 = vector.broadcast %cst_14 : f32 to vector<32x32xf32>
      %17 = arith.mulf %16, %15 : vector<32x32xf32>
      %cst_15 = arith.constant 4.471500e-02 : f32
      %18 = vector.broadcast %cst_15 : f32 to vector<32x32xf32>
      %19 = arith.mulf %18, %15 : vector<32x32xf32>
      %20 = arith.mulf %19, %15 : vector<32x32xf32>
      %21 = arith.mulf %20, %15 : vector<32x32xf32>
      %22 = arith.addf %15, %21 : vector<32x32xf32>
      %cst_16 = arith.constant 0.797884583 : f32
      %23 = vector.broadcast %cst_16 : f32 to vector<32x32xf32>
      %24 = arith.mulf %23, %22 : vector<32x32xf32>
      %25 = math.tanh %24 : vector<32x32xf32>
      %cst_17 = arith.constant 1.000000e+00 : f32
      %26 = vector.broadcast %cst_17 : f32 to vector<32x32xf32>
      %27 = arith.addf %26, %25 : vector<32x32xf32>
      %28 = arith.mulf %17, %27 : vector<32x32xf32>
      %c0_18 = arith.constant 0 : index
      %c0_19 = arith.constant 0 : index
      %29 = vector.load %arg6[%c0_18, %c0_19] : memref<1x32xf32, #tpu.memory_space<vmem>>, vector<1x32xf32>
      %30 = vector.broadcast %29 : vector<1x32xf32> to vector<32x32xf32>
      %31 = arith.mulf %28, %30 : vector<32x32xf32>
      %c0_20 = arith.constant 0 : index
      %c0_21 = arith.constant 0 : index
      %32 = vector.load %arg7[%c0_20, %c0_21] : memref<1x32xf32, #tpu.memory_space<vmem>>, vector<1x32xf32>
      %33 = vector.broadcast %32 : vector<1x32xf32> to vector<32x32xf32>
      %34 = arith.addf %31, %33 : vector<32x32xf32>
      %35 = arith.truncf %34 : vector<32x32xf32> to vector<32x32xbf16>
      %c0_22 = arith.constant 0 : index
      %c0_23 = arith.constant 0 : index
      %36 = vector.load %arg8[%c0_22, %c0_23] : memref<32x32xbf16, #tpu.memory_space<vmem>>, vector<32x32xbf16>
      tpu.vector_store %arg8[%c0_22, %c0_23], %35 {strides = array<i32>} : memref<32x32xbf16, #tpu.memory_space<vmem>>, vector<32x32xbf16>,
    } else {
    }
    return
  }
  func.func @transform_0(%arg0: i32, %arg1: i32, %arg2: i32) -> (i32, i32) {
    %c0_i32 = arith.constant 0 : i32
    return %arg0, %arg2 : i32, i32
  }
  func.func @transform_1(%arg0: i32, %arg1: i32, %arg2: i32) -> (i32, i32) {
    %c0_i32 = arith.constant 0 : i32
    return %arg2, %arg1 : i32, i32
  }
  func.func @transform_2(%arg0: i32, %arg1: i32, %arg2: i32) -> (i32, i32) {
    %c0_i32 = arith.constant 0 : i32
    %c0_i32_0 = arith.constant 0 : i32
    return %c0_i32, %arg1 : i32, i32
  }
  func.func @transform_3(%arg0: i32, %arg1: i32, %arg2: i32) -> (i32, i32) {
    %c0_i32 = arith.constant 0 : i32
    %c0_i32_0 = arith.constant 0 : i32
    return %c0_i32, %arg1 : i32, i32
  }
  func.func @transform_4(%arg0: i32, %arg1: i32, %arg2: i32) -> (i32, i32) {
    %c0_i32 = arith.constant 0 : i32
    %c0_i32_0 = arith.constant 0 : i32
    return %c0_i32, %arg1 : i32, i32
  }
  func.func @transform_5(%arg0: i32, %arg1: i32, %arg2: i32) -> (i32, i32) {
    %c0_i32 = arith.constant 0 : i32
    return %arg0, %arg1 : i32, i32
  }
}

module attributes {stable_mosaic.version = 11 : i64} {
  func.func @_head_kernel(%arg0: i32, %arg1: memref<2x16x32xbf16, #tpu.memory_space<vmem>>, %arg2: memref<32x19xbf16, #tpu.memory_space<vmem>>, %arg3: memref<1x19xf32, #tpu.memory_space<vmem>>, %arg4: memref<2x19xf32, #tpu.memory_space<vmem>>) attributes {dimension_semantics = [#tpu.dimension_semantics<arbitrary>], iteration_bounds = array<i64: 1>, scalar_prefetch = 0 : i64, scratch_operands = 0 : i64, tpu.core_type = #tpu.core_type<tc>, window_params = [{pipeline_mode = #tpu.pipeline_mode<synchronous>, transform_indices = @transform_0, window_bounds = array<i64: 2, 16, 32>}, {pipeline_mode = #tpu.pipeline_mode<synchronous>, transform_indices = @transform_1, window_bounds = array<i64: 32, 19>}, {pipeline_mode = #tpu.pipeline_mode<synchronous>, transform_indices = @transform_2, window_bounds = array<i64: 1, 19>}, {pipeline_mode = #tpu.pipeline_mode<synchronous>, transform_indices = @transform_3, window_bounds = array<i64: 2, 19>}]} {
    %c0 = arith.constant 0 : index
    %c0_0 = arith.constant 0 : index
    %c0_1 = arith.constant 0 : index
    %0 = vector.load %arg1[%c0, %c0_0, %c0_1] : memref<2x16x32xbf16, #tpu.memory_space<vmem>>, vector<2x16x32xbf16>
    %1 = arith.extf %0 : vector<2x16x32xbf16> to vector<2x16x32xf32>
    %cst = arith.constant dense<0.000000e+00> : vector<2x32xf32>
    %2 = vector.multi_reduction <add>, %1, %cst [1] : vector<2x16x32xf32> to vector<2x32xf32>
    %cst_2 = arith.constant 1.600000e+01 : f32
    %3 = vector.broadcast %cst_2 : f32 to vector<2x32xf32>
    %4 = arith.divf %2, %3 : vector<2x32xf32>
    %5 = arith.truncf %4 : vector<2x32xf32> to vector<2x32xbf16>
    %c0_3 = arith.constant 0 : index
    %c0_4 = arith.constant 0 : index
    %6 = vector.load %arg2[%c0_3, %c0_4] : memref<32x19xbf16, #tpu.memory_space<vmem>>, vector<32x19xbf16>
    %cst_5 = arith.constant dense<0.000000e+00> : vector<2x19xf32>
    %7 = tpu.matmul %5, %6, %cst_5 {dimension_numbers = #tpu.dot_dimension_numbers<[1], [0], [0], [1], [0, 0, 1, 1], [], []>} : vector<2x32xbf16>, vector<32x19xbf16>, vector<2x19xf32> -> vector<2x19xf32>
    %c0_6 = arith.constant 0 : index
    %c0_7 = arith.constant 0 : index
    %8 = vector.load %arg3[%c0_6, %c0_7] : memref<1x19xf32, #tpu.memory_space<vmem>>, vector<1x19xf32>
    %9 = vector.broadcast %8 : vector<1x19xf32> to vector<2x19xf32>
    %10 = arith.addf %7, %9 : vector<2x19xf32>
    %c0_8 = arith.constant 0 : index
    %c0_9 = arith.constant 0 : index
    %11 = vector.load %arg4[%c0_8, %c0_9] : memref<2x19xf32, #tpu.memory_space<vmem>>, vector<2x19xf32>
    tpu.vector_store %arg4[%c0_8, %c0_9], %10 {strides = array<i32>} : memref<2x19xf32, #tpu.memory_space<vmem>>, vector<2x19xf32>,
    return
  }
  func.func @transform_0(%arg0: i32) -> (i32, i32, i32) {
    %c0_i32 = arith.constant 0 : i32
    %c0_i32_0 = arith.constant 0 : i32
    %c0_i32_1 = arith.constant 0 : i32
    %c0_i32_2 = arith.constant 0 : i32
    return %c0_i32, %c0_i32_0, %c0_i32_1 : i32, i32, i32
  }
  func.func @transform_1(%arg0: i32) -> (i32, i32) {
    %c0_i32 = arith.constant 0 : i32
    %c0_i32_0 = arith.constant 0 : i32
    %c0_i32_1 = arith.constant 0 : i32
    return %c0_i32, %c0_i32_0 : i32, i32
  }
  func.func @transform_2(%arg0: i32) -> (i32, i32) {
    %c0_i32 = arith.constant 0 : i32
    %c0_i32_0 = arith.constant 0 : i32
    %c0_i32_1 = arith.constant 0 : i32
    return %c0_i32, %c0_i32_0 : i32, i32
  }
  func.func @transform_3(%arg0: i32) -> (i32, i32) {
    %c0_i32 = arith.constant 0 : i32
    %c0_i32_0 = arith.constant 0 : i32
    %c0_i32_1 = arith.constant 0 : i32
    return %c0_i32, %c0_i32_0 : i32, i32
  }
}

module attributes {stable_mosaic.version = 11 : i64} {
  func.func @_mixer_layer_kernel(%arg0: i32, %arg1: memref<1x4x4x32xbf16, #tpu.memory_space<vmem>>, %arg2: memref<9x32xf32, #tpu.memory_space<vmem>>, %arg3: memref<1x32xf32, #tpu.memory_space<vmem>>, %arg4: memref<1x32xf32, #tpu.memory_space<vmem>>, %arg5: memref<1x32xf32, #tpu.memory_space<vmem>>, %arg6: memref<32x32xbf16, #tpu.memory_space<vmem>>, %arg7: memref<1x32xf32, #tpu.memory_space<vmem>>, %arg8: memref<1x32xf32, #tpu.memory_space<vmem>>, %arg9: memref<1x32xf32, #tpu.memory_space<vmem>>, %arg10: memref<1x4x4x32xbf16, #tpu.memory_space<vmem>>, %arg11: memref<6x6x32xbf16, #tpu.memory_space<vmem>>) attributes {dimension_semantics = [#tpu.dimension_semantics<parallel>], iteration_bounds = array<i64: 2>, scalar_prefetch = 0 : i64, scratch_operands = 1 : i64, tpu.core_type = #tpu.core_type<tc>, window_params = [{transform_indices = @transform_0, window_bounds = array<i64: 1, 4, 4, 32>}, {pipeline_mode = #tpu.pipeline_mode<synchronous>, transform_indices = @transform_1, window_bounds = array<i64: 9, 32>}, {pipeline_mode = #tpu.pipeline_mode<synchronous>, transform_indices = @transform_2, window_bounds = array<i64: 1, 32>}, {pipeline_mode = #tpu.pipeline_mode<synchronous>, transform_indices = @transform_3, window_bounds = array<i64: 1, 32>}, {pipeline_mode = #tpu.pipeline_mode<synchronous>, transform_indices = @transform_4, window_bounds = array<i64: 1, 32>}, {pipeline_mode = #tpu.pipeline_mode<synchronous>, transform_indices = @transform_5, window_bounds = array<i64: 32, 32>}, {pipeline_mode = #tpu.pipeline_mode<synchronous>, transform_indices = @transform_6, window_bounds = array<i64: 1, 32>}, {pipeline_mode = #tpu.pipeline_mode<synchronous>, transform_indices = @transform_7, window_bounds = array<i64: 1, 32>}, {pipeline_mode = #tpu.pipeline_mode<synchronous>, transform_indices = @transform_8, window_bounds = array<i64: 1, 32>}, {transform_indices = @transform_9, window_bounds = array<i64: 1, 4, 4, 32>}]} {
    %c0 = arith.constant 0 : index
    %c0_0 = arith.constant 0 : index
    %c0_1 = arith.constant 0 : index
    %c0_2 = arith.constant 0 : index
    %0 = vector.load %arg1[%c0, %c0_0, %c0_1, %c0_2] : memref<1x4x4x32xbf16, #tpu.memory_space<vmem>>, vector<1x4x4x32xbf16>
    %1 = vector.shape_cast %0 : vector<1x4x4x32xbf16> to vector<4x4x32xbf16>
    %cst = arith.constant 0.000000e+00 : bf16
    %2 = vector.broadcast %cst : bf16 to vector<4x1x32xbf16>
    %cst_3 = arith.constant 0.000000e+00 : bf16
    %3 = vector.broadcast %cst_3 : bf16 to vector<1x6x32xbf16>
    %4 = tpu.concatenate %2, %1, %2 in 1 : vector<4x1x32xbf16>, vector<4x4x32xbf16>, vector<4x1x32xbf16> -> vector<4x6x32xbf16>
    %5 = tpu.concatenate %3, %4, %3 in 0 : vector<1x6x32xbf16>, vector<4x6x32xbf16>, vector<1x6x32xbf16> -> vector<6x6x32xbf16>
    %c0_4 = arith.constant 0 : index
    %c0_5 = arith.constant 0 : index
    %c0_6 = arith.constant 0 : index
    %6 = vector.load %arg11[%c0_4, %c0_5, %c0_6] : memref<6x6x32xbf16, #tpu.memory_space<vmem>>, vector<6x6x32xbf16>
    tpu.vector_store %arg11[%c0_4, %c0_5, %c0_6], %5 {strides = array<i32>} : memref<6x6x32xbf16, #tpu.memory_space<vmem>>, vector<6x6x32xbf16>,
    %c0_7 = arith.constant 0 : index
    %c0_8 = arith.constant 0 : index
    %7 = vector.load %arg2[%c0_7, %c0_8] : memref<9x32xf32, #tpu.memory_space<vmem>>, vector<9x32xf32>
    %c0_9 = arith.constant 0 : index
    %c0_10 = arith.constant 0 : index
    %8 = vector.load %arg3[%c0_9, %c0_10] : memref<1x32xf32, #tpu.memory_space<vmem>>, vector<1x32xf32>
    %c0_11 = arith.constant 0 : index
    %c0_12 = arith.constant 0 : index
    %9 = vector.load %arg4[%c0_11, %c0_12] : memref<1x32xf32, #tpu.memory_space<vmem>>, vector<1x32xf32>
    %c0_13 = arith.constant 0 : index
    %c0_14 = arith.constant 0 : index
    %10 = vector.load %arg5[%c0_13, %c0_14] : memref<1x32xf32, #tpu.memory_space<vmem>>, vector<1x32xf32>
    %c0_15 = arith.constant 0 : index
    %c0_16 = arith.constant 0 : index
    %11 = vector.load %arg7[%c0_15, %c0_16] : memref<1x32xf32, #tpu.memory_space<vmem>>, vector<1x32xf32>
    %c0_17 = arith.constant 0 : index
    %c0_18 = arith.constant 0 : index
    %12 = vector.load %arg8[%c0_17, %c0_18] : memref<1x32xf32, #tpu.memory_space<vmem>>, vector<1x32xf32>
    %c0_19 = arith.constant 0 : index
    %c0_20 = arith.constant 0 : index
    %13 = vector.load %arg9[%c0_19, %c0_20] : memref<1x32xf32, #tpu.memory_space<vmem>>, vector<1x32xf32>
    %c0_i32 = arith.constant 0 : i32
    %c4_i32 = arith.constant 4 : i32
    %14 = arith.muli %c0_i32, %c4_i32 : i32
    %15 = tpu.assume_multiple %14, 4 : i32
    %cst_21 = arith.constant 0.000000e+00 : f32
    %16 = vector.broadcast %cst_21 : f32 to vector<4x4x32xf32>
    %c0_i32_22 = arith.constant 0 : i32
    %17 = arith.addi %15, %c0_i32_22 : i32
    %18 = arith.index_cast %17 : i32 to index
    %c0_23 = arith.constant 0 : index
    %c0_24 = arith.constant 0 : index
    %19 = vector.load %arg11[%18, %c0_23, %c0_24] : memref<6x6x32xbf16, #tpu.memory_space<vmem>>, vector<4x6x32xbf16>
    %20 = vector.extract_strided_slice %19 {offsets = [0, 0, 0], sizes = [4, 4, 32], strides = [1, 1, 1]} : vector<4x6x32xbf16> to vector<4x4x32xbf16>
    %21 = vector.extract_strided_slice %7 {offsets = [0, 0], sizes = [1, 32], strides = [1, 1]} : vector<9x32xf32> to vector<1x32xf32>
    %22 = arith.extf %20 : vector<4x4x32xbf16> to vector<4x4x32xf32>
    %23 = vector.shape_cast %21 : vector<1x32xf32> to vector<1x1x32xf32>
    %24 = vector.broadcast %23 : vector<1x1x32xf32> to vector<4x4x32xf32>
    %25 = arith.mulf %22, %24 : vector<4x4x32xf32>
    %26 = arith.addf %16, %25 : vector<4x4x32xf32>
    %27 = vector.extract_strided_slice %19 {offsets = [0, 1, 0], sizes = [4, 4, 32], strides = [1, 1, 1]} : vector<4x6x32xbf16> to vector<4x4x32xbf16>
    %28 = vector.extract_strided_slice %7 {offsets = [1, 0], sizes = [1, 32], strides = [1, 1]} : vector<9x32xf32> to vector<1x32xf32>
    %29 = arith.extf %27 : vector<4x4x32xbf16> to vector<4x4x32xf32>
    %30 = vector.shape_cast %28 : vector<1x32xf32> to vector<1x1x32xf32>
    %31 = vector.broadcast %30 : vector<1x1x32xf32> to vector<4x4x32xf32>
    %32 = arith.mulf %29, %31 : vector<4x4x32xf32>
    %33 = arith.addf %26, %32 : vector<4x4x32xf32>
    %34 = vector.extract_strided_slice %19 {offsets = [0, 2, 0], sizes = [4, 4, 32], strides = [1, 1, 1]} : vector<4x6x32xbf16> to vector<4x4x32xbf16>
    %35 = vector.extract_strided_slice %7 {offsets = [2, 0], sizes = [1, 32], strides = [1, 1]} : vector<9x32xf32> to vector<1x32xf32>
    %36 = arith.extf %34 : vector<4x4x32xbf16> to vector<4x4x32xf32>
    %37 = vector.shape_cast %35 : vector<1x32xf32> to vector<1x1x32xf32>
    %38 = vector.broadcast %37 : vector<1x1x32xf32> to vector<4x4x32xf32>
    %39 = arith.mulf %36, %38 : vector<4x4x32xf32>
    %40 = arith.addf %33, %39 : vector<4x4x32xf32>
    %c1_i32 = arith.constant 1 : i32
    %41 = arith.addi %15, %c1_i32 : i32
    %42 = arith.index_cast %41 : i32 to index
    %c0_25 = arith.constant 0 : index
    %c0_26 = arith.constant 0 : index
    %43 = vector.load %arg11[%42, %c0_25, %c0_26] : memref<6x6x32xbf16, #tpu.memory_space<vmem>>, vector<4x6x32xbf16>
    %44 = vector.extract_strided_slice %43 {offsets = [0, 0, 0], sizes = [4, 4, 32], strides = [1, 1, 1]} : vector<4x6x32xbf16> to vector<4x4x32xbf16>
    %45 = vector.extract_strided_slice %7 {offsets = [3, 0], sizes = [1, 32], strides = [1, 1]} : vector<9x32xf32> to vector<1x32xf32>
    %46 = arith.extf %44 : vector<4x4x32xbf16> to vector<4x4x32xf32>
    %47 = vector.shape_cast %45 : vector<1x32xf32> to vector<1x1x32xf32>
    %48 = vector.broadcast %47 : vector<1x1x32xf32> to vector<4x4x32xf32>
    %49 = arith.mulf %46, %48 : vector<4x4x32xf32>
    %50 = arith.addf %40, %49 : vector<4x4x32xf32>
    %51 = vector.extract_strided_slice %43 {offsets = [0, 1, 0], sizes = [4, 4, 32], strides = [1, 1, 1]} : vector<4x6x32xbf16> to vector<4x4x32xbf16>
    %52 = vector.extract_strided_slice %7 {offsets = [4, 0], sizes = [1, 32], strides = [1, 1]} : vector<9x32xf32> to vector<1x32xf32>
    %53 = arith.extf %51 : vector<4x4x32xbf16> to vector<4x4x32xf32>
    %54 = vector.shape_cast %52 : vector<1x32xf32> to vector<1x1x32xf32>
    %55 = vector.broadcast %54 : vector<1x1x32xf32> to vector<4x4x32xf32>
    %56 = arith.mulf %53, %55 : vector<4x4x32xf32>
    %57 = arith.addf %50, %56 : vector<4x4x32xf32>
    %58 = vector.extract_strided_slice %43 {offsets = [0, 2, 0], sizes = [4, 4, 32], strides = [1, 1, 1]} : vector<4x6x32xbf16> to vector<4x4x32xbf16>
    %59 = vector.extract_strided_slice %7 {offsets = [5, 0], sizes = [1, 32], strides = [1, 1]} : vector<9x32xf32> to vector<1x32xf32>
    %60 = arith.extf %58 : vector<4x4x32xbf16> to vector<4x4x32xf32>
    %61 = vector.shape_cast %59 : vector<1x32xf32> to vector<1x1x32xf32>
    %62 = vector.broadcast %61 : vector<1x1x32xf32> to vector<4x4x32xf32>
    %63 = arith.mulf %60, %62 : vector<4x4x32xf32>
    %64 = arith.addf %57, %63 : vector<4x4x32xf32>
    %c2_i32 = arith.constant 2 : i32
    %65 = arith.addi %15, %c2_i32 : i32
    %66 = arith.index_cast %65 : i32 to index
    %c0_27 = arith.constant 0 : index
    %c0_28 = arith.constant 0 : index
    %67 = vector.load %arg11[%66, %c0_27, %c0_28] : memref<6x6x32xbf16, #tpu.memory_space<vmem>>, vector<4x6x32xbf16>
    %68 = vector.extract_strided_slice %67 {offsets = [0, 0, 0], sizes = [4, 4, 32], strides = [1, 1, 1]} : vector<4x6x32xbf16> to vector<4x4x32xbf16>
    %69 = vector.extract_strided_slice %7 {offsets = [6, 0], sizes = [1, 32], strides = [1, 1]} : vector<9x32xf32> to vector<1x32xf32>
    %70 = arith.extf %68 : vector<4x4x32xbf16> to vector<4x4x32xf32>
    %71 = vector.shape_cast %69 : vector<1x32xf32> to vector<1x1x32xf32>
    %72 = vector.broadcast %71 : vector<1x1x32xf32> to vector<4x4x32xf32>
    %73 = arith.mulf %70, %72 : vector<4x4x32xf32>
    %74 = arith.addf %64, %73 : vector<4x4x32xf32>
    %75 = vector.extract_strided_slice %67 {offsets = [0, 1, 0], sizes = [4, 4, 32], strides = [1, 1, 1]} : vector<4x6x32xbf16> to vector<4x4x32xbf16>
    %76 = vector.extract_strided_slice %7 {offsets = [7, 0], sizes = [1, 32], strides = [1, 1]} : vector<9x32xf32> to vector<1x32xf32>
    %77 = arith.extf %75 : vector<4x4x32xbf16> to vector<4x4x32xf32>
    %78 = vector.shape_cast %76 : vector<1x32xf32> to vector<1x1x32xf32>
    %79 = vector.broadcast %78 : vector<1x1x32xf32> to vector<4x4x32xf32>
    %80 = arith.mulf %77, %79 : vector<4x4x32xf32>
    %81 = arith.addf %74, %80 : vector<4x4x32xf32>
    %82 = vector.extract_strided_slice %67 {offsets = [0, 2, 0], sizes = [4, 4, 32], strides = [1, 1, 1]} : vector<4x6x32xbf16> to vector<4x4x32xbf16>
    %83 = vector.extract_strided_slice %7 {offsets = [8, 0], sizes = [1, 32], strides = [1, 1]} : vector<9x32xf32> to vector<1x32xf32>
    %84 = arith.extf %82 : vector<4x4x32xbf16> to vector<4x4x32xf32>
    %85 = vector.shape_cast %83 : vector<1x32xf32> to vector<1x1x32xf32>
    %86 = vector.broadcast %85 : vector<1x1x32xf32> to vector<4x4x32xf32>
    %87 = arith.mulf %84, %86 : vector<4x4x32xf32>
    %88 = arith.addf %81, %87 : vector<4x4x32xf32>
    %89 = vector.shape_cast %8 : vector<1x32xf32> to vector<1x1x32xf32>
    %90 = vector.broadcast %89 : vector<1x1x32xf32> to vector<4x4x32xf32>
    %91 = arith.addf %88, %90 : vector<4x4x32xf32>
    %cst_29 = arith.constant 5.000000e-01 : f32
    %92 = vector.broadcast %cst_29 : f32 to vector<4x4x32xf32>
    %93 = arith.mulf %92, %91 : vector<4x4x32xf32>
    %cst_30 = arith.constant 4.471500e-02 : f32
    %94 = vector.broadcast %cst_30 : f32 to vector<4x4x32xf32>
    %95 = arith.mulf %94, %91 : vector<4x4x32xf32>
    %96 = arith.mulf %95, %91 : vector<4x4x32xf32>
    %97 = arith.mulf %96, %91 : vector<4x4x32xf32>
    %98 = arith.addf %91, %97 : vector<4x4x32xf32>
    %cst_31 = arith.constant 0.797884583 : f32
    %99 = vector.broadcast %cst_31 : f32 to vector<4x4x32xf32>
    %100 = arith.mulf %99, %98 : vector<4x4x32xf32>
    %101 = math.tanh %100 : vector<4x4x32xf32>
    %cst_32 = arith.constant 1.000000e+00 : f32
    %102 = vector.broadcast %cst_32 : f32 to vector<4x4x32xf32>
    %103 = arith.addf %102, %101 : vector<4x4x32xf32>
    %104 = arith.mulf %93, %103 : vector<4x4x32xf32>
    %105 = vector.shape_cast %9 : vector<1x32xf32> to vector<1x1x32xf32>
    %106 = vector.broadcast %105 : vector<1x1x32xf32> to vector<4x4x32xf32>
    %107 = arith.mulf %104, %106 : vector<4x4x32xf32>
    %108 = vector.shape_cast %10 : vector<1x32xf32> to vector<1x1x32xf32>
    %109 = vector.broadcast %108 : vector<1x1x32xf32> to vector<4x4x32xf32>
    %110 = arith.addf %107, %109 : vector<4x4x32xf32>
    %c0_33 = arith.constant 0 : index
    %111 = arith.index_cast %15 : i32 to index
    %c0_34 = arith.constant 0 : index
    %c0_35 = arith.constant 0 : index
    %112 = vector.load %arg1[%c0_33, %111, %c0_34, %c0_35] : memref<1x4x4x32xbf16, #tpu.memory_space<vmem>>, vector<1x4x4x32xbf16>
    %113 = vector.shape_cast %112 : vector<1x4x4x32xbf16> to vector<4x4x32xbf16>
    %114 = arith.extf %113 : vector<4x4x32xbf16> to vector<4x4x32xf32>
    %115 = arith.addf %110, %114 : vector<4x4x32xf32>
    %116 = vector.shape_cast %115 : vector<4x4x32xf32> to vector<16x32xf32>
    %117 = arith.truncf %116 : vector<16x32xf32> to vector<16x32xbf16>
    %c0_36 = arith.constant 0 : index
    %c0_37 = arith.constant 0 : index
    %118 = vector.load %arg6[%c0_36, %c0_37] : memref<32x32xbf16, #tpu.memory_space<vmem>>, vector<32x32xbf16>
    %cst_38 = arith.constant dense<0.000000e+00> : vector<16x32xf32>
    %119 = tpu.matmul %117, %118, %cst_38 {dimension_numbers = #tpu.dot_dimension_numbers<[1], [0], [0], [1], [0, 0, 1, 1], [], []>} : vector<16x32xbf16>, vector<32x32xbf16>, vector<16x32xf32> -> vector<16x32xf32>
    %120 = vector.broadcast %11 : vector<1x32xf32> to vector<16x32xf32>
    %121 = arith.addf %119, %120 : vector<16x32xf32>
    %cst_39 = arith.constant 5.000000e-01 : f32
    %122 = vector.broadcast %cst_39 : f32 to vector<16x32xf32>
    %123 = arith.mulf %122, %121 : vector<16x32xf32>
    %cst_40 = arith.constant 4.471500e-02 : f32
    %124 = vector.broadcast %cst_40 : f32 to vector<16x32xf32>
    %125 = arith.mulf %124, %121 : vector<16x32xf32>
    %126 = arith.mulf %125, %121 : vector<16x32xf32>
    %127 = arith.mulf %126, %121 : vector<16x32xf32>
    %128 = arith.addf %121, %127 : vector<16x32xf32>
    %cst_41 = arith.constant 0.797884583 : f32
    %129 = vector.broadcast %cst_41 : f32 to vector<16x32xf32>
    %130 = arith.mulf %129, %128 : vector<16x32xf32>
    %131 = math.tanh %130 : vector<16x32xf32>
    %cst_42 = arith.constant 1.000000e+00 : f32
    %132 = vector.broadcast %cst_42 : f32 to vector<16x32xf32>
    %133 = arith.addf %132, %131 : vector<16x32xf32>
    %134 = arith.mulf %123, %133 : vector<16x32xf32>
    %135 = vector.broadcast %12 : vector<1x32xf32> to vector<16x32xf32>
    %136 = arith.mulf %134, %135 : vector<16x32xf32>
    %137 = vector.broadcast %13 : vector<1x32xf32> to vector<16x32xf32>
    %138 = arith.addf %136, %137 : vector<16x32xf32>
    %139 = vector.shape_cast %138 : vector<16x32xf32> to vector<4x4x32xf32>
    %140 = arith.truncf %139 : vector<4x4x32xf32> to vector<4x4x32xbf16>
    %c0_43 = arith.constant 0 : index
    %141 = arith.index_cast %15 : i32 to index
    %c0_44 = arith.constant 0 : index
    %c0_45 = arith.constant 0 : index
    %142 = vector.load %arg10[%c0_43, %141, %c0_44, %c0_45] : memref<1x4x4x32xbf16, #tpu.memory_space<vmem>>, vector<1x4x4x32xbf16>
    %143 = vector.shape_cast %142 : vector<1x4x4x32xbf16> to vector<4x4x32xbf16>
    %144 = vector.shape_cast %140 : vector<4x4x32xbf16> to vector<1x4x4x32xbf16>
    tpu.vector_store %arg10[%c0_43, %141, %c0_44, %c0_45], %144 {strides = array<i32>} : memref<1x4x4x32xbf16, #tpu.memory_space<vmem>>, vector<1x4x4x32xbf16>,
    %c1_i32_46 = arith.constant 1 : i32
    return
  }
  func.func @transform_0(%arg0: i32) -> (i32, i32, i32, i32) {
    %c0_i32 = arith.constant 0 : i32
    %c0_i32_0 = arith.constant 0 : i32
    %c0_i32_1 = arith.constant 0 : i32
    %c0_i32_2 = arith.constant 0 : i32
    return %arg0, %c0_i32, %c0_i32_0, %c0_i32_1 : i32, i32, i32, i32
  }
  func.func @transform_1(%arg0: i32) -> (i32, i32) {
    %c0_i32 = arith.constant 0 : i32
    %c0_i32_0 = arith.constant 0 : i32
    %c0_i32_1 = arith.constant 0 : i32
    return %c0_i32, %c0_i32_0 : i32, i32
  }
  func.func @transform_2(%arg0: i32) -> (i32, i32) {
    %c0_i32 = arith.constant 0 : i32
    %c0_i32_0 = arith.constant 0 : i32
    %c0_i32_1 = arith.constant 0 : i32
    return %c0_i32, %c0_i32_0 : i32, i32
  }
  func.func @transform_3(%arg0: i32) -> (i32, i32) {
    %c0_i32 = arith.constant 0 : i32
    %c0_i32_0 = arith.constant 0 : i32
    %c0_i32_1 = arith.constant 0 : i32
    return %c0_i32, %c0_i32_0 : i32, i32
  }
  func.func @transform_4(%arg0: i32) -> (i32, i32) {
    %c0_i32 = arith.constant 0 : i32
    %c0_i32_0 = arith.constant 0 : i32
    %c0_i32_1 = arith.constant 0 : i32
    return %c0_i32, %c0_i32_0 : i32, i32
  }
  func.func @transform_5(%arg0: i32) -> (i32, i32) {
    %c0_i32 = arith.constant 0 : i32
    %c0_i32_0 = arith.constant 0 : i32
    %c0_i32_1 = arith.constant 0 : i32
    return %c0_i32, %c0_i32_0 : i32, i32
  }
  func.func @transform_6(%arg0: i32) -> (i32, i32) {
    %c0_i32 = arith.constant 0 : i32
    %c0_i32_0 = arith.constant 0 : i32
    %c0_i32_1 = arith.constant 0 : i32
    return %c0_i32, %c0_i32_0 : i32, i32
  }
  func.func @transform_7(%arg0: i32) -> (i32, i32) {
    %c0_i32 = arith.constant 0 : i32
    %c0_i32_0 = arith.constant 0 : i32
    %c0_i32_1 = arith.constant 0 : i32
    return %c0_i32, %c0_i32_0 : i32, i32
  }
  func.func @transform_8(%arg0: i32) -> (i32, i32) {
    %c0_i32 = arith.constant 0 : i32
    %c0_i32_0 = arith.constant 0 : i32
    %c0_i32_1 = arith.constant 0 : i32
    return %c0_i32, %c0_i32_0 : i32, i32
  }
  func.func @transform_9(%arg0: i32) -> (i32, i32, i32, i32) {
    %c0_i32 = arith.constant 0 : i32
    %c0_i32_0 = arith.constant 0 : i32
    %c0_i32_1 = arith.constant 0 : i32
    %c0_i32_2 = arith.constant 0 : i32
    return %arg0, %c0_i32, %c0_i32_0, %c0_i32_1 : i32, i32, i32, i32
  }
}

</mosaic_0001>

<llo_original>
// kernel: convmixer_forward.7
$region0: #{convmixer_forward.7}
  #allocation0 [shape = 'u32[]', space=smem, size = 0x4, offset = 0x4, fixed_abs, tag = 'smem constant byte address 0x4 - core index']
  #allocation1 [shape = 'u32[144,128]{1,0:T(1,128)}', space=vmem, size = 0x12000, scoped, tag = 'internal scratch']
  %s0 = inlined_call_operand.vmem [shape: bf16[2,16,32], index: 0, kind: input, shape index: {}]
  %s1 = inlined_call_operand.vmem [shape: bf16[32,19], index: 1, kind: input, shape index: {}]
  %s2 = inlined_call_operand.vmem [shape: f32[1,19], index: 2, kind: input, shape index: {}]
  %s3 = inlined_call_operand.hbm [shape: f32[2,19], index: 3, kind: output, shape index: {}]
  %s4 = sld [smem:[#allocation0]]
  $region22: #{convmixer_forward.7} parent=0
    _
  %s6 = ssub.s32 1, %s4
  %s7 = scalar_select 0, %s6, %s4
  $region1: #{convmixer_forward.7} parent=0
    #allocation2 [shape = 'u8[1024]{0}', space=vmem, size = 0x400, scoped, tag = 'output window, operand 0, single buffered']
    #allocation3 [shape = 's32[1]{0}', space=sflag, size = 0x4, scoped, tag = 'scoped memory for convmixer_forward.7']
    %8 = vsyncpa [#allocation3], 0
    // Predicated region
    $region2: #{convmixer_forward.7} parent=1 // pred_check
      _
    $region3: #{convmixer_forward.7} parent=1 // pred_check_branch
      %10 = sbr.rel (0) target = $region5
    $region4: #{convmixer_forward.7} parent=1 // pred_region
      _
    $region5: #{convmixer_forward.7} parent=1 // pred_fallthru
      _
    // Predicated region
    $region6: #{convmixer_forward.7} parent=1 // pred_check
      _
    $region7: #{convmixer_forward.7} parent=1 // pred_check_branch
      %12 = sbr.rel (0) target = $region9
    $region8: #{convmixer_forward.7} parent=1 // pred_region
      _
    $region9: #{convmixer_forward.7} parent=1 // pred_fallthru
      _
    // Predicated region
    $region10: #{convmixer_forward.7} parent=1 // pred_check
      _
    $region11: #{convmixer_forward.7} parent=1 // pred_check_branch
      %14 = sbr.rel (0) target = $region13
    $region12: #{convmixer_forward.7} parent=1 // pred_region
      _
    $region13: #{convmixer_forward.7} parent=1 // pred_fallthru
      _
    %v16 = vld [vmem:[%s0] sm:$0xf]
    %v17 = vld [vmem:[%s0 + $0x4] sm:$0xf]
    %v18 = vld [vmem:[%s0 + $0x8] sm:$0xf]
    %v19 = vld [vmem:[%s0 + $0xc] sm:$0xf]
    %v20 = vunpack.c.l.bf16 %v16
    %v21 = vunpack.c.l.bf16 %v17
    %v22 = vunpack.c.l.bf16 %v18
    %v23 = vunpack.c.l.bf16 %v19
    %vm24 = vcmask 261120
    %v25 = vsel %vm24, %v20, 0.0
    %v26 = vsel %vm24, %v21, 0.0
    %v27 = vadd.f32 %v25, %v26
    %v28 = vrot.slane %v27, 4
    %v29 = vadd.f32 %v27, %v28
    %v30 = vrot.slane %v29, 2
    %v31 = vadd.f32 %v29, %v30
    %v32 = vrot.slane %v31, 1
    %v33 = vadd.f32 %v31, %v32
    %v34 = vsel %vm24, %v22, 0.0
    %v35 = vsel %vm24, %v23, 0.0
    %v36 = vadd.f32 %v34, %v35
    %v37 = vrot.slane %v36, 4
    %v38 = vadd.f32 %v36, %v37
    %v39 = vrot.slane %v38, 2
    %v40 = vadd.f32 %v38, %v39
    %v41 = vrot.slane %v40, 1
    %v42 = vadd.f32 %v40, %v41
    %v43 = vrcp.pop 16.0
    %v44 = vmul.f32 %v33, %v43
    %v45 = vmul.f32 %v42, %v43
    %v46 = vpack.c.bf16 %v44, %v44
    %v47 = vpack.c.bf16 %v45, %v45
    %v48 = vld [vmem:[%s1] sm:$0xf]
    %v49 = vld [vmem:[%s1 + $0x4] sm:$0xf]
    %v50 = vld [vmem:[%s1 + $0x8] sm:$0xf]
    %v51 = vld [vmem:[%s1 + $0xc] sm:$0xf]
    %v52 = vld [vmem:[%s2] sm:$0x1]
    %v54 = vlaneseq
    %v55 = vshrl.u32 %v54, 7
    %v56 = vsub.s32 0, %v55
    %v57 = vrot.slane %v52, %v56
    %v61 = vunpack.c.l.b16 %v46
    %v62 = vunpack.c.l.b16 %v47
    %vm63 = vcmask 1041409
    %v64 = vsel %vm63, %v62, %v61
    %v65 = vpack.c.b16 %v64, %v64
    %v70 = vunpack.c.l.b16 %v48
    %v71 = vunpack.c.l.b16 %v49
    %v72 = vunpack.c.l.b16 %v50
    %v73 = vunpack.c.l.b16 %v51
    %v74 = vpack.c.b16 %v71, %v70
    %v75 = vpack.c.b16 %v73, %v72
    %v79 = vsel %vm24, %v65, 0
    %81 = vmatprep.subr.bf16.mxu0 0
    %82 = vmatpush1.bf16.msra.mxu0 %v74
    %83 = vmatprep.subr.bf16.mxu0 0
    %84 = vmatpush1.bf16.msra.mxu0 %v75
    %85 = vmatprep.subr.bf16.mxu0 0
    %86 = vmatpush1.bf16.msra.mxu0 0
    %87 = vmatprep.subr.bf16.mxu0 0
    %88 = vmatpush1.bf16.msra.mxu0 0
    %89 = vmatprep.subr.bf16.mxu0 0
    %90 = vmatpush1.bf16.msra.mxu0 0
    %91 = vmatprep.subr.bf16.mxu0 0
    %92 = vmatpush1.bf16.msra.mxu0 0
    %93 = vmatprep.subr.bf16.mxu0 0
    %94 = vmatpush1.bf16.msra.mxu0 0
    %95 = vmatprep.subr.bf16.mxu0 0
    %96 = vmatpush1.bf16.msra.mxu0 0
    %97 = vmatprep.subr.bf16.mxu0 0
    %98 = vmatpush1.bf16.msra.mxu0 0
    %99 = vmatprep.subr.bf16.mxu0 0
    %100 = vmatpush1.bf16.msra.mxu0 0
    %101 = vmatprep.subr.bf16.mxu0 0
    %102 = vmatpush1.bf16.msra.mxu0 0
    %103 = vmatprep.subr.bf16.mxu0 0
    %104 = vmatpush1.bf16.msra.mxu0 0
    %105 = vmatprep.subr.bf16.mxu0 0
    %106 = vmatpush1.bf16.msra.mxu0 0
    %107 = vmatprep.subr.bf16.mxu0 0
    %108 = vmatpush1.bf16.msra.mxu0 0
    %109 = vmatprep.subr.bf16.mxu0 0
    %110 = vmatpush1.bf16.msra.mxu0 0
    %111 = vmatprep.subr.bf16.mxu0 0
    %112 = vmatpush1.bf16.msra.mxu0 0
    %113 = vmatprep.mubr.bf16.mxu0 0
    %114 = vmatmul.mubr.bf16.gmra.mrb[0].mxu0 %v79
    %v115 = vpop.f32.mrb[0].mxu0
    %v116 = vadd.f32 %v57, %v115
    %v117 = vpop.f32.mrb[0].mxu0
    %v118 = vpop.f32.mrb[0].mxu0
    %v119 = vpop.f32.mrb[0].mxu0
    %120 = vdwg.mxu0
    %vm121 = vcmask 148480
    %122 = vst.msk [vmem:[#allocation2] sm:$0x3] %vm121, %v116
    // Predicated region
    $region14: #{convmixer_forward.7} parent=1 // pred_check
      _
    $region15: #{convmixer_forward.7} parent=1 // pred_check_branch
      %124 = sbr.rel (0) target = $region17
    $region16: #{convmixer_forward.7} parent=1 // pred_region
      %s126 = ssub.s32 32, 32
      %127 = vsyncadd [#allocation3], %s126
      %s129 = sshll.u32 [#allocation2], 4
      %s130 = int_to_ptr.vmem [resolvable:$true] %s129
      %132 = dma.vmem_to_hbm [thread:$0]  %s130, 32, %s3, [#allocation3]
    $region17: #{convmixer_forward.7} parent=1 // pred_fallthru
      _
    // Predicated region
    $region18: #{convmixer_forward.7} parent=1 // pred_check
      _
    $region19: #{convmixer_forward.7} parent=1 // pred_check_branch
      %134 = sbr.rel (0) target = $region21
    $region20: #{convmixer_forward.7} parent=1 // pred_region
      %135 = dma.done [#allocation3], 32
    $region21: #{convmixer_forward.7} parent=1 // pred_fallthru
      _
    %136 = vsyncpa [#allocation3], 1

// kernel: convmixer_forward.4
$region0: #{convmixer_forward.4}
  #allocation0 [shape = 'u32[]', space=smem, size = 0x4, offset = 0x4, fixed_abs, tag = 'smem constant byte address 0x4 - core index']
  #allocation1 [shape = 'u32[144,128]{1,0:T(1,128)}', space=vmem, size = 0x12000, scoped, tag = 'internal scratch']
  #allocation2 [shape = 'f32[32,32]{1,0:T(8,128)}', space=vmem, size = 0x4000, scoped, tag = 'scratch operand']
  %s0 = inlined_call_operand.vmem [shape: bf16[32,64], index: 0, kind: input, shape index: {}]
  %s1 = inlined_call_operand.vmem [shape: bf16[64,32], index: 1, kind: input, shape index: {}]
  %s2 = inlined_call_operand.vmem [shape: f32[1,32], index: 2, kind: input, shape index: {}]
  %s3 = inlined_call_operand.vmem [shape: f32[1,32], index: 3, kind: input, shape index: {}]
  %s4 = inlined_call_operand.vmem [shape: f32[1,32], index: 4, kind: input, shape index: {}]
  %s5 = inlined_call_operand.vmem [shape: bf16[32,32], index: 5, kind: output, shape index: {}]
  %s6 = sld [smem:[#allocation0]]
  $region38: #{convmixer_forward.4} parent=0
    _
  %s8 = ssub.s32 1, %s6
  %s9 = scalar_select 0, %s8, %s6
  // Predicated region
  $region2: #{convmixer_forward.4} parent=0 // pred_check
    _
  $region3: #{convmixer_forward.4} parent=0 // pred_check_branch
    %11 = sbr.rel (0) target = $region5
  $region4: #{convmixer_forward.4} parent=0 // pred_region
    _
  $region5: #{convmixer_forward.4} parent=0 // pred_fallthru
    _
  // Predicated region
  $region6: #{convmixer_forward.4} parent=0 // pred_check
    _
  $region7: #{convmixer_forward.4} parent=0 // pred_check_branch
    %13 = sbr.rel (0) target = $region9
  $region8: #{convmixer_forward.4} parent=0 // pred_region
    _
  $region9: #{convmixer_forward.4} parent=0 // pred_fallthru
    _
  // Predicated region
  $region10: #{convmixer_forward.4} parent=0 // pred_check
    _
  $region11: #{convmixer_forward.4} parent=0 // pred_check_branch
    %15 = sbr.rel (0) target = $region13
  $region12: #{convmixer_forward.4} parent=0 // pred_region
    _
  $region13: #{convmixer_forward.4} parent=0 // pred_fallthru
    _
  // Predicated region
  $region14: #{convmixer_forward.4} parent=0 // pred_check
    _
  $region15: #{convmixer_forward.4} parent=0 // pred_check_branch
    %17 = sbr.rel (0) target = $region17
  $region16: #{convmixer_forward.4} parent=0 // pred_region
    _
  $region17: #{convmixer_forward.4} parent=0 // pred_fallthru
    _
  // Predicated region
  $region18: #{convmixer_forward.4} parent=0 // pred_check
    _
  $region19: #{convmixer_forward.4} parent=0 // pred_check_branch
    %19 = sbr.rel (0) target = $region21
  $region20: #{convmixer_forward.4} parent=0 // pred_region
    _
  $region21: #{convmixer_forward.4} parent=0 // pred_fallthru
    _
  %p21 = scmp.eq.s32.totalorder 0, 0
  // Predicated region
  $region22: #{convmixer_forward.4} parent=0 // pred_check
    %p22 = pneg %p21
  $region23: #{convmixer_forward.4} parent=0 // pred_check_branch
    %24 = sbr.rel (%p22) target = $region25
  $region24: #{convmixer_forward.4} parent=0 // pred_region
    %vm25 = vcmask 261120
    %26 = vst.msk [vmem:[#allocation2] sm:$0xff] %vm25, 0.0
    %27 = vst.msk [vmem:[#allocation2 + $0x8] sm:$0xff] %vm25, 0.0
    %28 = vst.msk [vmem:[#allocation2 + $0x10] sm:$0xff] %vm25, 0.0
    %29 = vst.msk [vmem:[#allocation2 + $0x18] sm:$0xff] %vm25, 0.0
  $region25: #{convmixer_forward.4} parent=0 // pred_fallthru
    _
  %v30 = vld [vmem:[#allocation2] sm:$0xff]
  %v31 = vld [vmem:[#allocation2 + $0x8] sm:$0xff]
  %v32 = vld [vmem:[#allocation2 + $0x10] sm:$0xff]
  %v33 = vld [vmem:[#allocation2 + $0x18] sm:$0xff]
  %v34 = vld [vmem:[%s0] sm:$0xf]
  %v35 = vld [vmem:[%s0 + $0x4] sm:$0xf]
  %v36 = vld [vmem:[%s0 + $0x8] sm:$0xf]
  %v37 = vld [vmem:[%s0 + $0xc] sm:$0xf]
  %v38 = vld [vmem:[%s1] sm:$0xf]
  %v39 = vld [vmem:[%s1 + $0x4] sm:$0xf]
  %v40 = vld [vmem:[%s1 + $0x8] sm:$0xf]
  %v41 = vld [vmem:[%s1 + $0xc] sm:$0xf]
  %v42 = vld [vmem:[%s1 + $0x10] sm:$0xf]
  %v43 = vld [vmem:[%s1 + $0x14] sm:$0xf]
  %v44 = vld [vmem:[%s1 + $0x18] sm:$0xf]
  %v45 = vld [vmem:[%s1 + $0x1c] sm:$0xf]
  %v50 = vunpack.c.l.b16 %v34
  %v51 = vunpack.c.l.b16 %v35
  %v52 = vunpack.c.l.b16 %v36
  %v53 = vunpack.c.l.b16 %v37
  %v54 = vpack.c.b16 %v51, %v50
  %v55 = vpack.c.b16 %v53, %v52
  %v64 = vunpack.c.l.b16 %v38
  %v65 = vunpack.c.l.b16 %v39
  %v66 = vunpack.c.l.b16 %v40
  %v67 = vunpack.c.l.b16 %v41
  %v68 = vunpack.c.l.b16 %v42
  %v69 = vunpack.c.l.b16 %v43
  %v70 = vunpack.c.l.b16 %v44
  %v71 = vunpack.c.l.b16 %v45
  %v72 = vpack.c.b16 %v65, %v64
  %v73 = vpack.c.b16 %v67, %v66
  %v74 = vpack.c.b16 %v69, %v68
  %v75 = vpack.c.b16 %v71, %v70
  %vm80 = vcmask 523264
  %v82 = vsel %vm80, %v54, 0
  %v85 = vsel %vm80, %v55, 0
  %87 = vmatprep.subr.bf16.mxu0 0
  %88 = vmatpush1.bf16.msra.mxu0 %v72
  %89 = vmatprep.subr.bf16.mxu0 0
  %90 = vmatpush1.bf16.msra.mxu0 %v73
  %91 = vmatprep.subr.bf16.mxu0 0
  %92 = vmatpush1.bf16.msra.mxu0 %v74
  %93 = vmatprep.subr.bf16.mxu0 0
  %94 = vmatpush1.bf16.msra.mxu0 %v75
  %95 = vmatprep.subr.bf16.mxu0 0
  %96 = vmatpush1.bf16.msra.mxu0 0
  %97 = vmatprep.subr.bf16.mxu0 0
  %98 = vmatpush1.bf16.msra.mxu0 0
  %99 = vmatprep.subr.bf16.mxu0 0
  %100 = vmatpush1.bf16.msra.mxu0 0
  %101 = vmatprep.subr.bf16.mxu0 0
  %102 = vmatpush1.bf16.msra.mxu0 0
  %103 = vmatprep.subr.bf16.mxu0 0
  %104 = vmatpush1.bf16.msra.mxu0 0
  %105 = vmatprep.subr.bf16.mxu0 0
  %106 = vmatpush1.bf16.msra.mxu0 0
  %107 = vmatprep.subr.bf16.mxu0 0
  %108 = vmatpush1.bf16.msra.mxu0 0
  %109 = vmatprep.subr.bf16.mxu0 0
  %110 = vmatpush1.bf16.msra.mxu0 0
  %111 = vmatprep.subr.bf16.mxu0 0
  %112 = vmatpush1.bf16.msra.mxu0 0
  %113 = vmatprep.subr.bf16.mxu0 0
  %114 = vmatpush1.bf16.msra.mxu0 0
  %115 = vmatprep.subr.bf16.mxu0 0
  %116 = vmatpush1.bf16.msra.mxu0 0
  %117 = vmatprep.subr.bf16.mxu0 0
  %118 = vmatpush1.bf16.msra.mxu0 0
  %119 = vmatprep.mubr.bf16.mxu0 0
  %120 = vmatmul.mubr.bf16.gmra.mrb[0].mxu0 %v82
  %v121 = vpop.f32.mrb[0].mxu0
  %v122 = vadd.f32 0.0, %v121
  %v123 = vpop.f32.mrb[0].mxu0
  %v124 = vpop.f32.mrb[0].mxu0
  %v125 = vadd.f32 0.0, %v124
  %v126 = vpop.f32.mrb[0].mxu0
  %127 = vmatprep.mubr.bf16.mxu0 0
  %128 = vmatmul.mubr.bf16.gmra.mrb[0].mxu0 %v85
  %v129 = vpop.f32.mrb[0].mxu0
  %v130 = vadd.f32 0.0, %v129
  %v131 = vpop.f32.mrb[0].mxu0
  %v132 = vpop.f32.mrb[0].mxu0
  %v133 = vadd.f32 0.0, %v132
  %v134 = vpop.f32.mrb[0].mxu0
  %135 = vdwg.mxu0
  %v136 = vadd.f32 %v30, %v122
  %v137 = vadd.f32 %v31, %v125
  %v138 = vadd.f32 %v32, %v130
  %v139 = vadd.f32 %v33, %v133
  %vm140 = vcmask 261120
  %141 = vst.msk [vmem:[#allocation2] sm:$0xff] %vm140, %v136
  %142 = vst.msk [vmem:[#allocation2 + $0x8] sm:$0xff] %vm140, %v137
  %143 = vst.msk [vmem:[#allocation2 + $0x10] sm:$0xff] %vm140, %v138
  %144 = vst.msk [vmem:[#allocation2 + $0x18] sm:$0xff] %vm140, %v139
  // Predicated region
  $region26: #{convmixer_forward.4} parent=0 // pred_check
    %p145 = pneg %p21
  $region27: #{convmixer_forward.4} parent=0 // pred_check_branch
    %147 = sbr.rel (%p145) target = $region29
  $region28: #{convmixer_forward.4} parent=0 // pred_region
    %v148 = vld [vmem:[#allocation2] sm:$0xff]
    %v149 = vld [vmem:[#allocation2 + $0x8] sm:$0xff]
    %v150 = vld [vmem:[#allocation2 + $0x10] sm:$0xff]
    %v151 = vld [vmem:[#allocation2 + $0x18] sm:$0xff]
    %v152 = vld [vmem:[%s2] sm:$0x1]
    %v154 = vlaneseq
    %v155 = vshrl.u32 %v154, 7
    %v156 = vsub.s32 0, %v155
    %v157 = vrot.slane %v152, %v156
    %v159 = vadd.f32 %v148, %v157
    %v160 = vadd.f32 %v149, %v157
    %v161 = vadd.f32 %v150, %v157
    %v162 = vadd.f32 %v151, %v157
    %v163 = vmul.f32 %v159, 0.5
    %v164 = vmul.f32 %v160, 0.5
    %v165 = vmul.f32 %v161, 0.5
    %v166 = vmul.f32 %v162, 0.5
    %v167 = vmul.f32 %v159, 0.044715
    %v168 = vmul.f32 %v160, 0.044715
    %v169 = vmul.f32 %v161, 0.044715
    %v170 = vmul.f32 %v162, 0.044715
    %v171 = vmul.f32 %v167, %v159
    %v172 = vmul.f32 %v168, %v160
    %v173 = vmul.f32 %v169, %v161
    %v174 = vmul.f32 %v170, %v162
    %v175 = vmul.f32 %v171, %v159
    %v176 = vmul.f32 %v172, %v160
    %v177 = vmul.f32 %v173, %v161
    %v178 = vmul.f32 %v174, %v162
    %v179 = vadd.f32 %v159, %v175
    %v180 = vadd.f32 %v160, %v176
    %v181 = vadd.f32 %v161, %v177
    %v182 = vadd.f32 %v162, %v178
    %v183 = vmul.f32 %v179, 0.7978846
    %v184 = vmul.f32 %v180, 0.7978846
    %v185 = vmul.f32 %v181, 0.7978846
    %v186 = vmul.f32 %v182, 0.7978846
    %v187 = vtanh.pop %v183
    %v188 = vtanh.pop %v184
    %v189 = vtanh.pop %v185
    %v190 = vtanh.pop %v186
    %v191 = vadd.f32 %v187, 1.0
    %v192 = vadd.f32 %v188, 1.0
    %v193 = vadd.f32 %v189, 1.0
    %v194 = vadd.f32 %v190, 1.0
    %v195 = vmul.f32 %v163, %v191
    %v196 = vmul.f32 %v164, %v192
    %v197 = vmul.f32 %v165, %v193
    %v198 = vmul.f32 %v166, %v194
    %v199 = vld [vmem:[%s3] sm:$0x1]
    %v201 = vlaneseq
    %v202 = vshrl.u32 %v201, 7
    %v203 = vsub.s32 0, %v202
    %v204 = vrot.slane %v199, %v203
    %v206 = vmul.f32 %v195, %v204
    %v207 = vmul.f32 %v196, %v204
    %v208 = vmul.f32 %v197, %v204
    %v209 = vmul.f32 %v198, %v204
    %v210 = vld [vmem:[%s4] sm:$0x1]
    %v212 = vlaneseq
    %v213 = vshrl.u32 %v212, 7
    %v214 = vsub.s32 0, %v213
    %v215 = vrot.slane %v210, %v214
    %v217 = vadd.f32 %v206, %v215
    %v218 = vadd.f32 %v207, %v215
    %v219 = vadd.f32 %v208, %v215
    %v220 = vadd.f32 %v209, %v215
    %v221 = vpack.c.bf16 %v218, %v217
    %v222 = vpack.c.bf16 %v220, %v219
    %v225 = vunpack.c.l.b16 %v221
    %v226 = vunpack.c.h.b16 %v221
    %v227 = vunpack.c.l.b16 %v222
    %v228 = vunpack.c.h.b16 %v222
    %v229 = vpack.c.b16 %v225, %v225
    %v230 = vpack.c.b16 %v226, %v226
    %v231 = vpack.c.b16 %v227, %v227
    %v232 = vpack.c.b16 %v228, %v228
    %vm237 = vcmask 257024
    %238 = vst.msk [vmem:[%s5] sm:$0xf] %vm237, %v229
    %239 = vst.msk [vmem:[%s5 + $0x4] sm:$0xf] %vm237, %v230
    %240 = vst.msk [vmem:[%s5 + $0x8] sm:$0xf] %vm237, %v231
    %241 = vst.msk [vmem:[%s5 + $0xc] sm:$0xf] %vm237, %v232
  $region29: #{convmixer_forward.4} parent=0 // pred_fallthru
    _
  // Predicated region
  $region30: #{convmixer_forward.4} parent=0 // pred_check
    _
  $region31: #{convmixer_forward.4} parent=0 // pred_check_branch
    %243 = sbr.rel (0) target = $region33
  $region32: #{convmixer_forward.4} parent=0 // pred_region
    _
  $region33: #{convmixer_forward.4} parent=0 // pred_fallthru
    _
  // Predicated region
  $region34: #{convmixer_forward.4} parent=0 // pred_check
    _
  $region35: #{convmixer_forward.4} parent=0 // pred_check_branch
    %245 = sbr.rel (0) target = $region37
  $region36: #{convmixer_forward.4} parent=0 // pred_region
    _
  $region37: #{convmixer_forward.4} parent=0 // pred_fallthru
    _

// kernel: convmixer_forward.5
$region0: #{convmixer_forward.5}
  #allocation0 [shape = 'u32[]', space=smem, size = 0x4, offset = 0x4, fixed_abs, tag = 'smem constant byte address 0x4 - core index']
  #allocation1 [shape = 'u32[144,128]{1,0:T(1,128)}', space=vmem, size = 0x12000, scoped, tag = 'internal scratch']
  #allocation2 [shape = 'bf16[6,6,32]{2,1,0:T(8,128)(2,1)}', space=vmem, size = 0x3000, scoped, tag = 'scratch operand']
  %s0 = inlined_call_operand.vmem [shape: bf16[2,4,4,32], index: 0, kind: input, shape index: {}]
  %s1 = inlined_call_operand.vmem [shape: f32[9,32], index: 1, kind: input, shape index: {}]
  %s2 = inlined_call_operand.vmem [shape: f32[1,32], index: 2, kind: input, shape index: {}]
  %s3 = inlined_call_operand.vmem [shape: f32[1,32], index: 3, kind: input, shape index: {}]
  %s4 = inlined_call_operand.vmem [shape: f32[1,32], index: 4, kind: input, shape index: {}]
  %s5 = inlined_call_operand.vmem [shape: bf16[32,32], index: 5, kind: input, shape index: {}]
  %s6 = inlined_call_operand.vmem [shape: f32[1,32], index: 6, kind: input, shape index: {}]
  %s7 = inlined_call_operand.vmem [shape: f32[1,32], index: 7, kind: input, shape index: {}]
  %s8 = inlined_call_operand.vmem [shape: f32[1,32], index: 8, kind: input, shape index: {}]
  %s9 = inlined_call_operand.vmem [shape: bf16[2,4,4,32], index: 9, kind: output, shape index: {}]
  %s10 = sld [smem:[#allocation0]]
  $region69: #{convmixer_forward.5} parent=0
    _
  %s12 = ssub.s32 1, %s10
  %s13 = scalar_select 0, %s12, %s10
  loop: start=0, step=1, limit=4
  $region2: #{convmixer_forward.5} parent=0 // loop_pre_header
    _
  $region3: #{convmixer_forward.5} parent=0 // loop_header
    %s15 = sphi 0, %s19
    %p16 = scmp.ge.s32.totalorder %s15, 4
    %s25 = sphi 0, %s27
    %s28 = sphi 0, %s25
    %s29 = sphi 0, %s28
    %s45 = sphi 0, %s29
    %s49 = sphi 0, %s49
    %s51 = sphi 0, %s49
    %s52 = sphi 0, %s51
    %s66 = sphi 0, %s52
    %s70 = sphi 0, %s70
    %s72 = sphi 0, %s70
    %s73 = sphi 0, %s72
    %s87 = sphi 0, %s73
    %s91 = sphi 0, %s91
    %s93 = sphi 0, %s91
    %s94 = sphi 0, %s93
    %s108 = sphi 0, %s94
    %s112 = sphi 0, %s112
    %s114 = sphi 0, %s112
    %s115 = sphi 0, %s114
    %s129 = sphi 0, %s115
    %s133 = sphi 0, %s133
    %s135 = sphi 0, %s133
    %s136 = sphi 0, %s135
    %s150 = sphi 0, %s136
    %s154 = sphi 0, %s154
    %s156 = sphi 0, %s154
    %s157 = sphi 0, %s156
    %s171 = sphi 0, %s157
    %s175 = sphi 0, %s175
    %s177 = sphi 0, %s175
    %s178 = sphi 0, %s177
    %s192 = sphi 0, %s178
    %s196 = sphi 0, %s196
    %s198 = sphi 0, %s196
    %s199 = sphi 0, %s198
    %s213 = sphi 0, %s199
    %s219 = sphi 0, %s221
    %s222 = sphi 0, %s219
    %s223 = sphi 0, %s222
    %s239 = sphi 0, %s223
  $region4: #{convmixer_forward.5} parent=0 // loop_header_branch
    %18 = sbr.rel (%p16) target = $region8
  $region5: #{convmixer_forward.5} parent=0 // loop_body
    %s20 = ssub.s32 %s15, 1
    %s21 = ssub.s32 %s15, 2
    %s22 = sadd.s32 %s15, 1
    %s23 = ssub.s32 %s15, %s22
    %p24 = scmp.eq.s32.totalorder %s23, 0
    %s26 = sadd.s32 %s25, 1
    %s27 = scalar_select %p24, %s25, %s26
    %p30 = pneg %p24
    %p31 = scmp.eq.s32.totalorder %s15, 1
    %p32 = por %p30, %p31
    %p33 = scmp.ne.s32.totalorder %s25, %s28
    %p34 = scmp.eq.s32.totalorder %s15, 0
    %p35 = por %p33, %p34
    %p36 = scmp.ne.s32.totalorder %s25, %s28
    %p37 = scmp.eq.s32.totalorder %s20, 1
    %p38 = por %p36, %p37
    %p39 = scmp.ne.s32.totalorder %s28, %s29
    %p40 = scmp.eq.s32.totalorder %s20, 0
    %p41 = por %p39, %p40
    %p42 = scmp.ne.s32.totalorder %s28, %s29
    %p43 = scmp.eq.s32.totalorder %s21, 1
    %p44 = por %p42, %p43
    %p46 = scmp.ne.s32.totalorder %s29, %s45
    %p47 = scmp.eq.s32.totalorder %s21, 0
    %p48 = por %p46, %p47
    %s50 = sadd.s32 %s49, 1
    %p53 = scmp.eq.s32.totalorder %s15, 1
    %p54 = scmp.ne.s32.totalorder %s49, %s51
    %p55 = scmp.eq.s32.totalorder %s15, 0
    %p56 = por %p54, %p55
    %p57 = scmp.ne.s32.totalorder %s49, %s51
    %p58 = scmp.eq.s32.totalorder %s20, 1
    %p59 = por %p57, %p58
    %p60 = scmp.ne.s32.totalorder %s51, %s52
    %p61 = scmp.eq.s32.totalorder %s20, 0
    %p62 = por %p60, %p61
    %p63 = scmp.ne.s32.totalorder %s51, %s52
    %p64 = scmp.eq.s32.totalorder %s21, 1
    %p65 = por %p63, %p64
    %p67 = scmp.ne.s32.totalorder %s52, %s66
    %p68 = scmp.eq.s32.totalorder %s21, 0
    %p69 = por %p67, %p68
    %s71 = sadd.s32 %s70, 1
    %p74 = scmp.eq.s32.totalorder %s15, 1
    %p75 = scmp.ne.s32.totalorder %s70, %s72
    %p76 = scmp.eq.s32.totalorder %s15, 0
    %p77 = por %p75, %p76
    %p78 = scmp.ne.s32.totalorder %s70, %s72
    %p79 = scmp.eq.s32.totalorder %s20, 1
    %p80 = por %p78, %p79
    %p81 = scmp.ne.s32.totalorder %s72, %s73
    %p82 = scmp.eq.s32.totalorder %s20, 0
    %p83 = por %p81, %p82
    %p84 = scmp.ne.s32.totalorder %s72, %s73
    %p85 = scmp.eq.s32.totalorder %s21, 1
    %p86 = por %p84, %p85
    %p88 = scmp.ne.s32.totalorder %s73, %s87
    %p89 = scmp.eq.s32.totalorder %s21, 0
    %p90 = por %p88, %p89
    %s92 = sadd.s32 %s91, 1
    %p95 = scmp.eq.s32.totalorder %s15, 1
    %p96 = scmp.ne.s32.totalorder %s91, %s93
    %p97 = scmp.eq.s32.totalorder %s15, 0
    %p98 = por %p96, %p97
    %p99 = scmp.ne.s32.totalorder %s91, %s93
    %p100 = scmp.eq.s32.totalorder %s20, 1
    %p101 = por %p99, %p100
    %p102 = scmp.ne.s32.totalorder %s93, %s94
    %p103 = scmp.eq.s32.totalorder %s20, 0
    %p104 = por %p102, %p103
    %p105 = scmp.ne.s32.totalorder %s93, %s94
    %p106 = scmp.eq.s32.totalorder %s21, 1
    %p107 = por %p105, %p106
    %p109 = scmp.ne.s32.totalorder %s94, %s108
    %p110 = scmp.eq.s32.totalorder %s21, 0
    %p111 = por %p109, %p110
    %s113 = sadd.s32 %s112, 1
    %p116 = scmp.eq.s32.totalorder %s15, 1
    %p117 = scmp.ne.s32.totalorder %s112, %s114
    %p118 = scmp.eq.s32.totalorder %s15, 0
    %p119 = por %p117, %p118
    %p120 = scmp.ne.s32.totalorder %s112, %s114
    %p121 = scmp.eq.s32.totalorder %s20, 1
    %p122 = por %p120, %p121
    %p123 = scmp.ne.s32.totalorder %s114, %s115
    %p124 = scmp.eq.s32.totalorder %s20, 0
    %p125 = por %p123, %p124
    %p126 = scmp.ne.s32.totalorder %s114, %s115
    %p127 = scmp.eq.s32.totalorder %s21, 1
    %p128 = por %p126, %p127
    %p130 = scmp.ne.s32.totalorder %s115, %s129
    %p131 = scmp.eq.s32.totalorder %s21, 0
    %p132 = por %p130, %p131
    %s134 = sadd.s32 %s133, 1
    %p137 = scmp.eq.s32.totalorder %s15, 1
    %p138 = scmp.ne.s32.totalorder %s133, %s135
    %p139 = scmp.eq.s32.totalorder %s15, 0
    %p140 = por %p138, %p139
    %p141 = scmp.ne.s32.totalorder %s133, %s135
    %p142 = scmp.eq.s32.totalorder %s20, 1
    %p143 = por %p141, %p142
    %p144 = scmp.ne.s32.totalorder %s135, %s136
    %p145 = scmp.eq.s32.totalorder %s20, 0
    %p146 = por %p144, %p145
    %p147 = scmp.ne.s32.totalorder %s135, %s136
    %p148 = scmp.eq.s32.totalorder %s21, 1
    %p149 = por %p147, %p148
    %p151 = scmp.ne.s32.totalorder %s136, %s150
    %p152 = scmp.eq.s32.totalorder %s21, 0
    %p153 = por %p151, %p152
    %s155 = sadd.s32 %s154, 1
    %p158 = scmp.eq.s32.totalorder %s15, 1
    %p159 = scmp.ne.s32.totalorder %s154, %s156
    %p160 = scmp.eq.s32.totalorder %s15, 0
    %p161 = por %p159, %p160
    %p162 = scmp.ne.s32.totalorder %s154, %s156
    %p163 = scmp.eq.s32.totalorder %s20, 1
    %p164 = por %p162, %p163
    %p165 = scmp.ne.s32.totalorder %s156, %s157
    %p166 = scmp.eq.s32.totalorder %s20, 0
    %p167 = por %p165, %p166
    %p168 = scmp.ne.s32.totalorder %s156, %s157
    %p169 = scmp.eq.s32.totalorder %s21, 1
    %p170 = por %p168, %p169
    %p172 = scmp.ne.s32.totalorder %s157, %s171
    %p173 = scmp.eq.s32.totalorder %s21, 0
    %p174 = por %p172, %p173
    %s176 = sadd.s32 %s175, 1
    %p179 = scmp.eq.s32.totalorder %s15, 1
    %p180 = scmp.ne.s32.totalorder %s175, %s177
    %p181 = scmp.eq.s32.totalorder %s15, 0
    %p182 = por %p180, %p181
    %p183 = scmp.ne.s32.totalorder %s175, %s177
    %p184 = scmp.eq.s32.totalorder %s20, 1
    %p185 = por %p183, %p184
    %p186 = scmp.ne.s32.totalorder %s177, %s178
    %p187 = scmp.eq.s32.totalorder %s20, 0
    %p188 = por %p186, %p187
    %p189 = scmp.ne.s32.totalorder %s177, %s178
    %p190 = scmp.eq.s32.totalorder %s21, 1
    %p191 = por %p189, %p190
    %p193 = scmp.ne.s32.totalorder %s178, %s192
    %p194 = scmp.eq.s32.totalorder %s21, 0
    %p195 = por %p193, %p194
    %s197 = sadd.s32 %s196, 1
    %p200 = scmp.eq.s32.totalorder %s15, 1
    %p201 = scmp.ne.s32.totalorder %s196, %s198
    %p202 = scmp.eq.s32.totalorder %s15, 0
    %p203 = por %p201, %p202
    %p204 = scmp.ne.s32.totalorder %s196, %s198
    %p205 = scmp.eq.s32.totalorder %s20, 1
    %p206 = por %p204, %p205
    %p207 = scmp.ne.s32.totalorder %s198, %s199
    %p208 = scmp.eq.s32.totalorder %s20, 0
    %p209 = por %p207, %p208
    %p210 = scmp.ne.s32.totalorder %s198, %s199
    %p211 = scmp.eq.s32.totalorder %s21, 1
    %p212 = por %p210, %p211
    %p214 = scmp.ne.s32.totalorder %s199, %s213
    %p215 = scmp.eq.s32.totalorder %s21, 0
    %p216 = por %p214, %p215
    %s217 = ssub.s32 %s15, %s22
    %p218 = scmp.eq.s32.totalorder %s217, 0
    %s220 = sadd.s32 %s219, 1
    %s221 = scalar_select %p218, %s219, %s220
    %p224 = pneg %p218
    %p225 = scmp.eq.s32.totalorder %s15, 1
    %p226 = por %p224, %p225
    %p227 = scmp.ne.s32.totalorder %s219, %s222
    %p228 = scmp.eq.s32.totalorder %s15, 0
    %p229 = por %p227, %p228
    %p230 = scmp.ne.s32.totalorder %s219, %s222
    %p231 = scmp.eq.s32.totalorder %s20, 1
    %p232 = por %p230, %p231
    %p233 = scmp.ne.s32.totalorder %s222, %s223
    %p234 = scmp.eq.s32.totalorder %s20, 0
    %p235 = por %p233, %p234
    %p236 = scmp.ne.s32.totalorder %s222, %s223
    %p237 = scmp.eq.s32.totalorder %s21, 1
    %p238 = por %p236, %p237
    %p240 = scmp.ne.s32.totalorder %s223, %s239
    %p241 = scmp.eq.s32.totalorder %s21, 0
    %p242 = por %p240, %p241
    %p243 = scmp.le.s32.totalorder 1, %s15
    %p244 = scmp.lt.s32.totalorder %s15, 3
    %p245 = pnand %p243, %p244
    %p246 = pneg %p245
    // Predicated region
    $region9: #{convmixer_forward.5} parent=5 // pred_check
      _
    $region10: #{convmixer_forward.5} parent=5 // pred_check_branch
      %248 = sbr.rel (%p245) target = $region12
    $region11: #{convmixer_forward.5} parent=5 // pred_region
      %s249 = ssub.s32 %s15, 1
      // Predicated region
      $region13: #{convmixer_forward.5} parent=11 // pred_check
        %p250 = pneg %p62
      $region14: #{convmixer_forward.5} parent=11 // pred_check_branch
        %252 = sbr.rel (%p250) target = $region16
      $region15: #{convmixer_forward.5} parent=11 // pred_region
        _
      $region16: #{convmixer_forward.5} parent=11 // pred_fallthru
        _
      // Predicated region
      $region17: #{convmixer_forward.5} parent=11 // pred_check
        %p253 = pneg %p83
      $region18: #{convmixer_forward.5} parent=11 // pred_check_branch
        %255 = sbr.rel (%p253) target = $region20
      $region19: #{convmixer_forward.5} parent=11 // pred_region
        _
      $region20: #{convmixer_forward.5} parent=11 // pred_fallthru
        _
      // Predicated region
      $region21: #{convmixer_forward.5} parent=11 // pred_check
        %p256 = pneg %p104
      $region22: #{convmixer_forward.5} parent=11 // pred_check_branch
        %258 = sbr.rel (%p256) target = $region24
      $region23: #{convmixer_forward.5} parent=11 // pred_region
        _
      $region24: #{convmixer_forward.5} parent=11 // pred_fallthru
        _
      // Predicated region
      $region25: #{convmixer_forward.5} parent=11 // pred_check
        %p259 = pneg %p125
      $region26: #{convmixer_forward.5} parent=11 // pred_check_branch
        %261 = sbr.rel (%p259) target = $region28
      $region27: #{convmixer_forward.5} parent=11 // pred_region
        _
      $region28: #{convmixer_forward.5} parent=11 // pred_fallthru
        _
      // Predicated region
      $region29: #{convmixer_forward.5} parent=11 // pred_check
        %p262 = pneg %p146
      $region30: #{convmixer_forward.5} parent=11 // pred_check_branch
        %264 = sbr.rel (%p262) target = $region32
      $region31: #{convmixer_forward.5} parent=11 // pred_region
        _
      $region32: #{convmixer_forward.5} parent=11 // pred_fallthru
        _
      // Predicated region
      $region33: #{convmixer_forward.5} parent=11 // pred_check
        %p265 = pneg %p167
      $region34: #{convmixer_forward.5} parent=11 // pred_check_branch
        %267 = sbr.rel (%p265) target = $region36
      $region35: #{convmixer_forward.5} parent=11 // pred_region
        _
      $region36: #{convmixer_forward.5} parent=11 // pred_fallthru
        _
      // Predicated region
      $region37: #{convmixer_forward.5} parent=11 // pred_check
        %p268 = pneg %p188
      $region38: #{convmixer_forward.5} parent=11 // pred_check_branch
        %270 = sbr.rel (%p268) target = $region40
      $region39: #{convmixer_forward.5} parent=11 // pred_region
        _
      $region40: #{convmixer_forward.5} parent=11 // pred_fallthru
        _
      // Predicated region
      $region41: #{convmixer_forward.5} parent=11 // pred_check
        %p271 = pneg %p209
      $region42: #{convmixer_forward.5} parent=11 // pred_check_branch
        %273 = sbr.rel (%p271) target = $region44
      $region43: #{convmixer_forward.5} parent=11 // pred_region
        _
      $region44: #{convmixer_forward.5} parent=11 // pred_fallthru
        _
    $region12: #{convmixer_forward.5} parent=5 // pred_fallthru
      _
    %p274 = scmp.lt.s32.totalorder %s15, 2
    // Predicated region
    $region45: #{convmixer_forward.5} parent=5 // pred_check
      %p275 = pneg %p274
    $region46: #{convmixer_forward.5} parent=5 // pred_check_branch
      %277 = sbr.rel (%p275) target = $region48
    $region47: #{convmixer_forward.5} parent=5 // pred_region
      // Predicated region
      $region49: #{convmixer_forward.5} parent=47 // pred_check
        %p278 = pneg %p35
      $region50: #{convmixer_forward.5} parent=47 // pred_check_branch
        %280 = sbr.rel (%p278) target = $region52
      $region51: #{convmixer_forward.5} parent=47 // pred_region
        %p281 = scmp.lt.s32.totalorder %s15, 1
        %s282 = scalar_select %p281, %s15, 1
        %s283 = smul.addr %s282, 4
        %s284 = smul.addr %s283, 2
        %s285 = scalar_lea.vmem %s0, %s284
      $region52: #{convmixer_forward.5} parent=47 // pred_fallthru
        _
    $region48: #{convmixer_forward.5} parent=5 // pred_fallthru
      _
    %p286 = scmp.le.s32.totalorder 1, %s15
    %p287 = scmp.lt.s32.totalorder %s15, 3
    %p288 = pnand %p286, %p287
    %p289 = pneg %p288
    // Predicated region
    $region53: #{convmixer_forward.5} parent=5 // pred_check
      _
    $region54: #{convmixer_forward.5} parent=5 // pred_check_branch
      %291 = sbr.rel (%p288) target = $region56
    $region55: #{convmixer_forward.5} parent=5 // pred_region
      %s292 = ssub.s32 %s15, 1
      %p293 = scmp.lt.s32.totalorder %s20, 1
      %s294 = scalar_select %p293, %s20, 1
      %s295 = smul.addr %s294, 4
      %s296 = smul.addr %s295, 2
      %s297 = scalar_lea.vmem %s0, %s296
      %p298 = pneg %p41
      %p299 = pneg %p38
      %p300 = pneg %p62
      %p301 = pneg %p59
      %p302 = pneg %p83
      %p303 = pneg %p80
      %p304 = pneg %p104
      %p305 = pneg %p101
      %p306 = pneg %p125
      %p307 = pneg %p122
      %p308 = pneg %p146
      %p309 = pneg %p143
      %p310 = pneg %p167
      %p311 = pneg %p164
      %p312 = pneg %p188
      %p313 = pneg %p185
      %p314 = pneg %p209
      %p315 = pneg %p206
      %p316 = pneg %p235
      %p317 = pneg %p232
      %p318 = scmp.lt.s32.totalorder %s20, 1
      %s319 = scalar_select %p318, %s20, 1
      %s320 = smul.addr %s319, 4
      %s321 = smul.addr %s320, 2
      %s322 = scalar_lea.vmem %s9, %s321
      %p323 = scmp.lt.s32.totalorder %s20, 1
      %s324 = scalar_select %p323, %s20, 1
      %s325 = smul.addr %s324, 4
      %s326 = smul.addr %s325, 2
      %s327 = scalar_lea.vmem %s0, %s326
      %p328 = scmp.lt.s32.totalorder %s20, 1
      %s329 = scalar_select %p328, %s20, 1
      %s330 = smul.addr %s329, 4
      %s331 = smul.addr %s330, 2
      %s332 = scalar_lea.vmem %s9, %s331
      %v334 = vld [vmem:[%s327] sm:$0x3]
      %v335 = vld [vmem:[%s327 + $0x2] sm:$0x3]
      %v336 = vld [vmem:[%s327 + $0x4] sm:$0x3]
      %v337 = vld [vmem:[%s327 + $0x6] sm:$0x3]
      %v343 = vunpack.c.l.s4 1983009808
      %v344 = vunpack.c.0.s8 %v343
      %v345 = vlaneseq
      %v346 = vshrl.u32 %v345, 7
      %v347 = vsub.s32 %v344, %v346
      %v348 = vrot.slane %v334, %v347
      %v350 = vunpack.c.l.s4 1983009808
      %v351 = vunpack.c.0.s8 %v350
      %v352 = vlaneseq
      %v353 = vshrl.u32 %v352, 7
      %v354 = vsub.s32 %v351, %v353
      %v355 = vrot.slane %v335, %v354
      %v357 = vunpack.c.l.s4 1983009808
      %v358 = vunpack.c.0.s8 %v357
      %v359 = vlaneseq
      %v360 = vshrl.u32 %v359, 7
      %v361 = vsub.s32 %v358, %v360
      %v362 = vrot.slane %v336, %v361
      %v364 = vunpack.c.l.s4 1983009808
      %v365 = vunpack.c.0.s8 %v364
      %v366 = vlaneseq
      %v367 = vshrl.u32 %v366, 7
      %v368 = vsub.s32 %v365, %v367
      %v369 = vrot.slane %v337, %v368
      %v371 = vshrl.u32 %v348, 16
      %v373 = vrot.slane %v371, 7
      %v374 = vshll.u32 %v348, 16
      %v376 = vor.u32 %v373, %v374
      %v378 = vshrl.u32 %v355, 16
      %v380 = vrot.slane %v378, 7
      %v381 = vshll.u32 %v355, 16
      %v383 = vor.u32 %v380, %v381
      %v385 = vshrl.u32 %v362, 16
      %v387 = vrot.slane %v385, 7
      %v388 = vshll.u32 %v362, 16
      %v390 = vor.u32 %v387, %v388
      %v392 = vshrl.u32 %v369, 16
      %v394 = vrot.slane %v392, 7
      %v395 = vshll.u32 %v369, 16
      %v397 = vor.u32 %v394, %v395
      %vm402 = vcmask 1040384
      %vm403 = vsmask.f32 256
      %vm404 = vmand %vm402, %vm403
      %v405 = vsel %vm404, 0, %v376
      %v406 = vsel %vm404, 0, %v383
      %v407 = vsel %vm404, 0, %v390
      %v408 = vsel %vm404, 0, %v397
      %vm409 = vcmask 1042432
      %vm410 = vsmask.f32 2304
      %vm411 = vmand %vm409, %vm410
      %v412 = vsel %vm411, %v405, 0
      %v413 = vsel %vm411, %v406, 0
      %v414 = vsel %vm411, %v407, 0
      %v415 = vsel %vm411, %v408, 0
      %vm416 = vcmask 256000
      %417 = vst.msk [vmem:[#allocation2] sm:$0x7] %vm416, 0
      %418 = vst.msk [vmem:[#allocation2 + $0x4] sm:$0x7] %vm416, %v412
      %419 = vst.msk [vmem:[#allocation2 + $0x8] sm:$0x7] %vm416, %v413
      %420 = vst.msk [vmem:[#allocation2 + $0xc] sm:$0x7] %vm416, %v414
      %421 = vst.msk [vmem:[#allocation2 + $0x10] sm:$0x7] %vm416, %v415
      %422 = vst.msk [vmem:[#allocation2 + $0x14] sm:$0x7] %vm416, 0
      %v423 = vld [vmem:[%s1] sm:$0xff]
      %v424 = vld [vmem:[%s1 + $0x8] sm:$0x1]
      %v425 = vld [vmem:[%s2] sm:$0x1]
      %v426 = vld [vmem:[%s3] sm:$0x1]
      %v427 = vld [vmem:[%s4] sm:$0x1]
      %v428 = vld [vmem:[%s6] sm:$0x1]
      %v429 = vld [vmem:[%s7] sm:$0x1]
      %v430 = vld [vmem:[%s8] sm:$0x1]
      %v431 = vld [vmem:[#allocation2] sm:$0x7]
      %v432 = vld [vmem:[#allocation2 + $0x4] sm:$0x7]
      %v433 = vld [vmem:[#allocation2 + $0x8] sm:$0x7]
      %v434 = vld [vmem:[#allocation2 + $0xc] sm:$0x7]
      %v435 = vunpack.c.l.bf16 %v431
      %v436 = vunpack.c.l.bf16 %v432
      %v437 = vunpack.c.l.bf16 %v433
      %v438 = vunpack.c.l.bf16 %v434
      %v439 = vlaneseq
      %v440 = vshrl.u32 %v439, 7
      %v441 = vsub.s32 0, %v440
      %v442 = vrot.slane %v423, %v441
      %v443 = vmul.f32 %v435, %v442
      %v444 = vmul.f32 %v436, %v442
      %v445 = vmul.f32 %v437, %v442
      %v446 = vmul.f32 %v438, %v442
      %v447 = vadd.f32 %v443, 0.0
      %v448 = vadd.f32 %v444, 0.0
      %v449 = vadd.f32 %v445, 0.0
      %v450 = vadd.f32 %v446, 0.0
      %v451 = vlaneseq
      %v452 = vshrl.u32 %v451, 7
      %v453 = vsub.s32 1, %v452
      %v454 = vrot.slane %v423, %v453
      %v455 = vmul.f32 %v435, %v454
      %v456 = vmul.f32 %v436, %v454
      %v457 = vmul.f32 %v437, %v454
      %v458 = vmul.f32 %v438, %v454
      %v463 = vrot.slane %v455, 1
      %v464 = vrot.slane %v456, 1
      %v465 = vrot.slane %v457, 1
      %v466 = vrot.slane %v458, 1
      %v471 = vadd.f32 %v447, %v463
      %v472 = vadd.f32 %v448, %v464
      %v473 = vadd.f32 %v449, %v465
      %v474 = vadd.f32 %v450, %v466
      %v475 = vlaneseq
      %v476 = vshrl.u32 %v475, 7
      %v477 = vsub.s32 2, %v476
      %v478 = vrot.slane %v423, %v477
      %v479 = vmul.f32 %v435, %v478
      %v480 = vmul.f32 %v436, %v478
      %v481 = vmul.f32 %v437, %v478
      %v482 = vmul.f32 %v438, %v478
      %v487 = vrot.slane %v479, 2
      %v488 = vrot.slane %v480, 2
      %v489 = vrot.slane %v481, 2
      %v490 = vrot.slane %v482, 2
      %v495 = vadd.f32 %v471, %v487
      %v496 = vadd.f32 %v472, %v488
      %v497 = vadd.f32 %v473, %v489
      %v498 = vadd.f32 %v474, %v490
      %s499 = sadd.s32 0, 1
      %s500 = smul.addr %s499, 4
      %s501 = scalar_lea.vmem [#allocation2], %s500
      %v502 = vld [vmem:[%s501] sm:$0x7]
      %v503 = vld [vmem:[%s501 + $0x4] sm:$0x7]
      %v504 = vld [vmem:[%s501 + $0x8] sm:$0x7]
      %v505 = vld [vmem:[%s501 + $0xc] sm:$0x7]
      %v506 = vunpack.c.l.bf16 %v502
      %v507 = vunpack.c.l.bf16 %v503
      %v508 = vunpack.c.l.bf16 %v504
      %v509 = vunpack.c.l.bf16 %v505
      %v510 = vlaneseq
      %v511 = vshrl.u32 %v510, 7
      %v512 = vsub.s32 3, %v511
      %v513 = vrot.slane %v423, %v512
      %v514 = vmul.f32 %v506, %v513
      %v515 = vmul.f32 %v507, %v513
      %v516 = vmul.f32 %v508, %v513
      %v517 = vmul.f32 %v509, %v513
      %v518 = vadd.f32 %v495, %v514
      %v519 = vadd.f32 %v496, %v515
      %v520 = vadd.f32 %v497, %v516
      %v521 = vadd.f32 %v498, %v517
      %v522 = vlaneseq
      %v523 = vshrl.u32 %v522, 7
      %v524 = vsub.s32 4, %v523
      %v525 = vrot.slane %v423, %v524
      %v526 = vmul.f32 %v506, %v525
      %v527 = vmul.f32 %v507, %v525
      %v528 = vmul.f32 %v508, %v525
      %v529 = vmul.f32 %v509, %v525
      %v534 = vrot.slane %v526, 1
      %v535 = vrot.slane %v527, 1
      %v536 = vrot.slane %v528, 1
      %v537 = vrot.slane %v529, 1
      %v542 = vadd.f32 %v518, %v534
      %v543 = vadd.f32 %v519, %v535
      %v544 = vadd.f32 %v520, %v536
      %v545 = vadd.f32 %v521, %v537
      %v546 = vlaneseq
      %v547 = vshrl.u32 %v546, 7
      %v548 = vsub.s32 5, %v547
      %v549 = vrot.slane %v423, %v548
      %v550 = vmul.f32 %v506, %v549
      %v551 = vmul.f32 %v507, %v549
      %v552 = vmul.f32 %v508, %v549
      %v553 = vmul.f32 %v509, %v549
      %v558 = vrot.slane %v550, 2
      %v559 = vrot.slane %v551, 2
      %v560 = vrot.slane %v552, 2
      %v561 = vrot.slane %v553, 2
      %v566 = vadd.f32 %v542, %v558
      %v567 = vadd.f32 %v543, %v559
      %v568 = vadd.f32 %v544, %v560
      %v569 = vadd.f32 %v545, %v561
      %s570 = sadd.s32 0, 2
      %s571 = smul.addr %s570, 4
      %s572 = scalar_lea.vmem [#allocation2], %s571
      %v573 = vld [vmem:[%s572] sm:$0x7]
      %v574 = vld [vmem:[%s572 + $0x4] sm:$0x7]
      %v575 = vld [vmem:[%s572 + $0x8] sm:$0x7]
      %v576 = vld [vmem:[%s572 + $0xc] sm:$0x7]
      %v577 = vunpack.c.l.bf16 %v573
      %v578 = vunpack.c.l.bf16 %v574
      %v579 = vunpack.c.l.bf16 %v575
      %v580 = vunpack.c.l.bf16 %v576
      %v581 = vlaneseq
      %v582 = vshrl.u32 %v581, 7
      %v583 = vsub.s32 6, %v582
      %v584 = vrot.slane %v423, %v583
      %v585 = vmul.f32 %v577, %v584
      %v586 = vmul.f32 %v578, %v584
      %v587 = vmul.f32 %v579, %v584
      %v588 = vmul.f32 %v580, %v584
      %v589 = vadd.f32 %v566, %v585
      %v590 = vadd.f32 %v567, %v586
      %v591 = vadd.f32 %v568, %v587
      %v592 = vadd.f32 %v569, %v588
      %v593 = vlaneseq
      %v594 = vshrl.u32 %v593, 7
      %v595 = vsub.s32 7, %v594
      %v596 = vrot.slane %v423, %v595
      %v597 = vmul.f32 %v577, %v596
      %v598 = vmul.f32 %v578, %v596
      %v599 = vmul.f32 %v579, %v596
      %v600 = vmul.f32 %v580, %v596
      %v605 = vrot.slane %v597, 1
      %v606 = vrot.slane %v598, 1
      %v607 = vrot.slane %v599, 1
      %v608 = vrot.slane %v600, 1
      %v613 = vadd.f32 %v589, %v605
      %v614 = vadd.f32 %v590, %v606
      %v615 = vadd.f32 %v591, %v607
      %v616 = vadd.f32 %v592, %v608
      %v617 = vlaneseq
      %v618 = vshrl.u32 %v617, 7
      %v619 = vsub.s32 0, %v618
      %v620 = vrot.slane %v424, %v619
      %v621 = vmul.f32 %v577, %v620
      %v622 = vmul.f32 %v578, %v620
      %v623 = vmul.f32 %v579, %v620
      %v624 = vmul.f32 %v580, %v620
      %v629 = vrot.slane %v621, 2
      %v630 = vrot.slane %v622, 2
      %v631 = vrot.slane %v623, 2
      %v632 = vrot.slane %v624, 2
      %v637 = vadd.f32 %v613, %v629
      %v638 = vadd.f32 %v614, %v630
      %v639 = vadd.f32 %v615, %v631
      %v640 = vadd.f32 %v616, %v632
      %v642 = vlaneseq
      %v643 = vshrl.u32 %v642, 7
      %v644 = vsub.s32 0, %v643
      %v645 = vrot.slane %v425, %v644
      %v647 = vadd.f32 %v637, %v645
      %v648 = vadd.f32 %v638, %v645
      %v649 = vadd.f32 %v639, %v645
      %v650 = vadd.f32 %v640, %v645
      %v651 = vmul.f32 %v647, 0.5
      %v652 = vmul.f32 %v648, 0.5
      %v653 = vmul.f32 %v649, 0.5
      %v654 = vmul.f32 %v650, 0.5
      %v655 = vmul.f32 %v647, 0.044715
      %v656 = vmul.f32 %v648, 0.044715
      %v657 = vmul.f32 %v649, 0.044715
      %v658 = vmul.f32 %v650, 0.044715
      %v659 = vmul.f32 %v655, %v647
      %v660 = vmul.f32 %v656, %v648
      %v661 = vmul.f32 %v657, %v649
      %v662 = vmul.f32 %v658, %v650
      %v663 = vmul.f32 %v659, %v647
      %v664 = vmul.f32 %v660, %v648
      %v665 = vmul.f32 %v661, %v649
      %v666 = vmul.f32 %v662, %v650
      %v667 = vadd.f32 %v647, %v663
      %v668 = vadd.f32 %v648, %v664
      %v669 = vadd.f32 %v649, %v665
      %v670 = vadd.f32 %v650, %v666
      %v671 = vmul.f32 %v667, 0.7978846
      %v672 = vmul.f32 %v668, 0.7978846
      %v673 = vmul.f32 %v669, 0.7978846
      %v674 = vmul.f32 %v670, 0.7978846
      %v675 = vtanh.pop %v671
      %v676 = vtanh.pop %v672
      %v677 = vtanh.pop %v673
      %v678 = vtanh.pop %v674
      %v679 = vadd.f32 %v675, 1.0
      %v680 = vadd.f32 %v676, 1.0
      %v681 = vadd.f32 %v677, 1.0
      %v682 = vadd.f32 %v678, 1.0
      %v683 = vmul.f32 %v651, %v679
      %v684 = vmul.f32 %v652, %v680
      %v685 = vmul.f32 %v653, %v681
      %v686 = vmul.f32 %v654, %v682
      %v688 = vlaneseq
      %v689 = vshrl.u32 %v688, 7
      %v690 = vsub.s32 0, %v689
      %v691 = vrot.slane %v426, %v690
      %v693 = vmul.f32 %v683, %v691
      %v694 = vmul.f32 %v684, %v691
      %v695 = vmul.f32 %v685, %v691
      %v696 = vmul.f32 %v686, %v691
      %v698 = vlaneseq
      %v699 = vshrl.u32 %v698, 7
      %v700 = vsub.s32 0, %v699
      %v701 = vrot.slane %v427, %v700
      %v703 = vadd.f32 %v693, %v701
      %v704 = vadd.f32 %v694, %v701
      %v705 = vadd.f32 %v695, %v701
      %v706 = vadd.f32 %v696, %v701
      %v707 = vld [vmem:[%s327] sm:$0x3]
      %v708 = vld [vmem:[%s327 + $0x2] sm:$0x3]
      %v709 = vld [vmem:[%s327 + $0x4] sm:$0x3]
      %v710 = vld [vmem:[%s327 + $0x6] sm:$0x3]
      %v711 = vunpack.c.l.bf16 %v707
      %v712 = vunpack.c.l.bf16 %v708
      %v713 = vunpack.c.l.bf16 %v709
      %v714 = vunpack.c.l.bf16 %v710
      %v715 = vadd.f32 %v703, %v711
      %v716 = vadd.f32 %v704, %v712
      %v717 = vadd.f32 %v705, %v713
      %v718 = vadd.f32 %v706, %v714
      %v723 = vcombine.low %v715, %v716
      %v724 = vcombine.low %v717, %v718
      %v727 = vpack.c.bf16 %v724, %v723
      %v728 = vld [vmem:[%s5] sm:$0xf]
      %v729 = vld [vmem:[%s5 + $0x4] sm:$0xf]
      %v730 = vld [vmem:[%s5 + $0x8] sm:$0xf]
      %v731 = vld [vmem:[%s5 + $0xc] sm:$0xf]
      %v733 = vlaneseq
      %v734 = vshrl.u32 %v733, 7
      %v735 = vsub.s32 0, %v734
      %v736 = vrot.slane %v428, %v735
      %v742 = vunpack.c.l.b16 %v728
      %v743 = vunpack.c.l.b16 %v729
      %v744 = vunpack.c.l.b16 %v730
      %v745 = vunpack.c.l.b16 %v731
      %v746 = vpack.c.b16 %v743, %v742
      %v747 = vpack.c.b16 %v745, %v744
      %vm750 = vcmask 261120
      %v752 = vsel %vm750, %v727, 0
      %754 = vmatprep.subr.bf16.mxu0 0
      %755 = vmatpush1.bf16.msra.mxu0 %v746
      %756 = vmatprep.subr.bf16.mxu0 0
      %757 = vmatpush1.bf16.msra.mxu0 %v747
      %758 = vmatprep.subr.bf16.mxu0 0
      %759 = vmatpush1.bf16.msra.mxu0 0
      %760 = vmatprep.subr.bf16.mxu0 0
      %761 = vmatpush1.bf16.msra.mxu0 0
      %762 = vmatprep.subr.bf16.mxu0 0
      %763 = vmatpush1.bf16.msra.mxu0 0
      %764 = vmatprep.subr.bf16.mxu0 0
      %765 = vmatpush1.bf16.msra.mxu0 0
      %766 = vmatprep.subr.bf16.mxu0 0
      %767 = vmatpush1.bf16.msra.mxu0 0
      %768 = vmatprep.subr.bf16.mxu0 0
      %769 = vmatpush1.bf16.msra.mxu0 0
      %770 = vmatprep.subr.bf16.mxu0 0
      %771 = vmatpush1.bf16.msra.mxu0 0
      %772 = vmatprep.subr.bf16.mxu0 0
      %773 = vmatpush1.bf16.msra.mxu0 0
      %774 = vmatprep.subr.bf16.mxu0 0
      %775 = vmatpush1.bf16.msra.mxu0 0
      %776 = vmatprep.subr.bf16.mxu0 0
      %777 = vmatpush1.bf16.msra.mxu0 0
      %778 = vmatprep.subr.bf16.mxu0 0
      %779 = vmatpush1.bf16.msra.mxu0 0
      %780 = vmatprep.subr.bf16.mxu0 0
      %781 = vmatpush1.bf16.msra.mxu0 0
      %782 = vmatprep.subr.bf16.mxu0 0
      %783 = vmatpush1.bf16.msra.mxu0 0
      %784 = vmatprep.subr.bf16.mxu0 0
      %785 = vmatpush1.bf16.msra.mxu0 0
      %786 = vmatprep.mubr.bf16.mxu0 0
      %787 = vmatmul.mubr.bf16.gmra.mrb[0].mxu0 %v752
      %v788 = vpop.f32.mrb[0].mxu0
      %v789 = vadd.f32 %v736, %v788
      %v790 = vpop.f32.mrb[0].mxu0
      %v791 = vpop.f32.mrb[0].mxu0
      %v792 = vadd.f32 %v736, %v791
      %v793 = vpop.f32.mrb[0].mxu0
      %794 = vdwg.mxu0
      %v795 = vmul.f32 %v789, 0.5
      %v796 = vmul.f32 %v792, 0.5
      %v797 = vmul.f32 %v789, 0.044715
      %v798 = vmul.f32 %v792, 0.044715
      %v799 = vmul.f32 %v797, %v789
      %v800 = vmul.f32 %v798, %v792
      %v801 = vmul.f32 %v799, %v789
      %v802 = vmul.f32 %v800, %v792
      %v803 = vadd.f32 %v789, %v801
      %v804 = vadd.f32 %v792, %v802
      %v805 = vmul.f32 %v803, 0.7978846
      %v806 = vmul.f32 %v804, 0.7978846
      %v807 = vtanh.pop %v805
      %v808 = vtanh.pop %v806
      %v809 = vadd.f32 %v807, 1.0
      %v810 = vadd.f32 %v808, 1.0
      %v811 = vmul.f32 %v795, %v809
      %v812 = vmul.f32 %v796, %v810
      %v814 = vlaneseq
      %v815 = vshrl.u32 %v814, 7
      %v816 = vsub.s32 0, %v815
      %v817 = vrot.slane %v429, %v816
      %v819 = vmul.f32 %v811, %v817
      %v820 = vmul.f32 %v812, %v817
      %v822 = vlaneseq
      %v823 = vshrl.u32 %v822, 7
      %v824 = vsub.s32 0, %v823
      %v825 = vrot.slane %v430, %v824
      %v827 = vadd.f32 %v819, %v825
      %v828 = vadd.f32 %v820, %v825
      %v831 = vcombine.high %v827, %v827
      %v832 = vcombine.high %v828, %v828
      %v835 = vpack.c.bf16 %v827, %v827
      %v836 = vpack.c.bf16 %v831, %v831
      %v837 = vpack.c.bf16 %v828, %v828
      %v838 = vpack.c.bf16 %v832, %v832
      %vm839 = vcmask 254976
      %840 = vst.msk [vmem:[%s332] sm:$0x3] %vm839, %v835
      %841 = vst.msk [vmem:[%s332 + $0x2] sm:$0x3] %vm839, %v836
      %842 = vst.msk [vmem:[%s332 + $0x4] sm:$0x3] %vm839, %v837
      %843 = vst.msk [vmem:[%s332 + $0x6] sm:$0x3] %vm839, %v838
      %p844 = scmp.lt.s32.totalorder %s20, 1
      %s845 = scalar_select %p844, %s20, 1
      %s846 = smul.addr %s845, 4
      %s847 = smul.addr %s846, 2
      %s848 = scalar_lea.vmem %s9, %s847
      // Predicated region
      $region57: #{convmixer_forward.5} parent=55 // pred_check
        %p849 = pneg %p232
      $region58: #{convmixer_forward.5} parent=55 // pred_check_branch
        %851 = sbr.rel (%p849) target = $region60
      $region59: #{convmixer_forward.5} parent=55 // pred_region
        _
      $region60: #{convmixer_forward.5} parent=55 // pred_fallthru
        _
    $region56: #{convmixer_forward.5} parent=5 // pred_fallthru
      _
    %p852 = scmp.le.s32.totalorder 2, %s15
    // Predicated region
    $region61: #{convmixer_forward.5} parent=5 // pred_check
      %p853 = pneg %p852
    $region62: #{convmixer_forward.5} parent=5 // pred_check_branch
      %855 = sbr.rel (%p853) target = $region64
    $region63: #{convmixer_forward.5} parent=5 // pred_region
      %s856 = ssub.s32 %s15, 2
      // Predicated region
      $region65: #{convmixer_forward.5} parent=63 // pred_check
        %p857 = pneg %p238
      $region66: #{convmixer_forward.5} parent=63 // pred_check_branch
        %859 = sbr.rel (%p857) target = $region68
      $region67: #{convmixer_forward.5} parent=63 // pred_region
        %p860 = scmp.lt.s32.totalorder %s21, 1
        %s861 = scalar_select %p860, %s21, 1
        %s862 = smul.addr %s861, 4
        %s863 = smul.addr %s862, 2
        %s864 = scalar_lea.vmem %s9, %s863
      $region68: #{convmixer_forward.5} parent=63 // pred_fallthru
        _
    $region64: #{convmixer_forward.5} parent=5 // pred_fallthru
      _
  $region6: #{convmixer_forward.5} parent=0 // loop_footer
    %s19 = sadd.s32 1, %s15
  $region7: #{convmixer_forward.5} parent=0 // loop_footer_branch
    %14 = sbr.rel target = $region3
  $region8: #{convmixer_forward.5} parent=0 // loop_exit
    _

</llo_original>
